<compile_context>
chip_gen: v7x
topology: tpu7x:2x2x1
jax: 0.10.0
libtpu: 0.0.40
codegen_flags: <defaults>
</compile_context>

<pallas_src>
import functools

import numpy as np
import jax
import jax.numpy as jnp
from jax.experimental import pallas as pl
from jax.experimental.pallas import tpu as pltpu

STATE_DIM = 16
ACTION_DIM = 8
H_ACTOR = 256
H_CRITIC = 128
H_FUSED = H_ACTOR + H_CRITIC          # 384
LANES = 128                           # packed-output width (one full lane group)
OUT3_W = 2 * LANES                    # fused-head output width: [logits(128) | value | 0...]
IN_W = 32                             # packed input width: [state(16) | action(1) | 0...]
LOGP_LANE = 16                        # output lane offset of the per-action log-softmax
_NEG = -1e30                          # FINITE softmax pad bias (see prepare_params invariant)


# ----------------------------------------------------------------------------- kernel

def actor_critic_kernel(x_ref, w1_ref, b1_ref, w2_ref, b2_ref, w3_ref, b3_ref,
                        out_ref, *, tanh_bf16):
    """One batch tile.  Packed output lanes (f32):
         [0, 8)    softmax probs
         8         log_prob(action)
         9         critic value
         10        entropy
         [16, 24)  per-action log-softmax (consumed by act())
    """
    cdt = jnp.bfloat16 if tanh_bf16 else jnp.float32

    xs = x_ref[...]                                             # (TB, 32) f32
    # action sits in lane STATE_DIM; extract with a lane-select + reduce (no width-1 slice)
    in_lane = jax.lax.broadcasted_iota(jnp.int32, xs.shape, 1)
    act = jnp.sum(jnp.where(in_lane == STATE_DIM, xs, 0.0),
                  axis=-1, keepdims=True).astype(jnp.int32)     # (TB, 1)
    xb = xs.astype(jnp.bfloat16)                                # action/zero lanes hit 0-rows of w1

    # ---- 3 fused MXU matmuls (f32 accumulate), actor || critic block structure ----
    h1 = jnp.tanh((jnp.dot(xb, w1_ref[...], preferred_element_type=jnp.float32)
                   + b1_ref[...]).astype(cdt))                              # (TB, 384)
    h2 = jnp.tanh((jnp.dot(h1.astype(jnp.bfloat16), w2_ref[...],
                           preferred_element_type=jnp.float32)
                   + b2_ref[...]).astype(cdt))                              # (TB, 384)
    o3 = jnp.dot(h2.astype(jnp.bfloat16), w3_ref[...],
                 preferred_element_type=jnp.float32) + b3_ref[...]          # (TB, 256)

    logits = o3[:, :LANES]                     # pad lanes carry FINITE bias -1e30
    # lanes 129..255 of o3 are exactly 0, so a plain reduce yields the value column
    value = jnp.sum(o3[:, LANES:], axis=-1, keepdims=True)                  # (TB, 1)

    # ---- softmax / log-softmax / entropy (f32) ----
    m = jnp.max(logits, axis=-1, keepdims=True)
    e = jnp.exp(logits - m)                            # pad lanes underflow to exactly 0
    denom = jnp.sum(e, axis=-1, keepdims=True)
    probs = e / denom                                  # exact normalization
    log_probs = (logits - m) - jnp.log(denom)          # finite on pad lanes

    rows = logits.shape[0]
    lane = jax.lax.broadcasted_iota(jnp.int32, (rows, LANES), 1)
    logp = jnp.sum(jnp.where(lane == act, log_probs, 0.0), axis=-1, keepdims=True)
    ent = -jnp.sum(probs * log_probs, axis=-1, keepdims=True)   # pads: 0 * finite = 0

    # shift log_probs[0..7] into lanes 16..23 (XLU rotate; separate bundle slot)
    lp = pltpu.roll(log_probs, LOGP_LANE, 1)

    # ---- additive masked packing: independent FMAs, no serial select chain ----
    f32 = jnp.float32
    packed = (probs * (lane < ACTION_DIM).astype(f32)
              + logp * (lane == ACTION_DIM).astype(f32)
              + value * (lane == ACTION_DIM + 1).astype(f32)
              + ent * (lane == ACTION_DIM + 2).astype(f32)
              + lp * ((lane >= LOGP_LANE) & (lane < LOGP_LANE + ACTION_DIM)).astype(f32))
    out_ref[...] = packed                                       # single unmasked (TB,128) store


# ----------------------------------------------------------------------------- params

def init_params(key, state_dim=STATE_DIM, action_dim=ACTION_DIM):
    """PyTorch-default-style init U(-1/sqrt(fan_in), 1/sqrt(fan_in)); weights (in, out)."""
    def linear(k, fan_in, fan_out):
        k1, k2 = jax.random.split(k)
        bound = 1.0 / (fan_in ** 0.5)
        w = jax.random.uniform(k1, (fan_in, fan_out), jnp.float32, -bound, bound)
        b = jax.random.uniform(k2, (1, fan_out), jnp.float32, -bound, bound)
        return w, b

    ks = jax.random.split(key, 6)
    aw1, ab1 = linear(ks[0], state_dim, H_ACTOR)
    aw2, ab2 = linear(ks[1], H_ACTOR, H_ACTOR)
    aw3, ab3 = linear(ks[2], H_ACTOR, action_dim)
    cw1, cb1 = linear(ks[3], state_dim, H_CRITIC)
    cw2, cb2 = linear(ks[4], H_CRITIC, H_CRITIC)
    cw3, cb3 = linear(ks[5], H_CRITIC, 1)
    return (aw1, ab1, aw2, ab2, aw3, ab3, cw1, cb1, cw2, cb2, cw3, cb3)


def prepare_params(params):
    """Fuse actor/critic into 3 block matmuls, pad the head to 128 lanes, cast w->bf16, b->f32."""
    aw1, ab1, aw2, ab2, aw3, ab3, cw1, cb1, cw2, cb2, cw3, cb3 = params

    # layer 1: (32, 384); rows 16..31 are zero so the packed action/zero input lanes drop out
    w1 = jnp.zeros((IN_W, H_FUSED), jnp.float32)
    w1 = w1.at[:STATE_DIM, :H_ACTOR].set(aw1)
    w1 = w1.at[:STATE_DIM, H_ACTOR:].set(cw1)
    b1 = jnp.concatenate([ab1, cb1], axis=1)

    # layer 2: block-diagonal (384, 384) = [[aw2, 0], [0, cw2]]
    w2 = jnp.zeros((H_FUSED, H_FUSED), jnp.float32)
    w2 = w2.at[:H_ACTOR, :H_ACTOR].set(aw2)
    w2 = w2.at[H_ACTOR:, H_ACTOR:].set(cw2)
    b2 = jnp.concatenate([ab2, cb2], axis=1)

    # heads: (384, 256); cols 0..7 actor logits, 8..127 softmax pad, col 128 critic value
    w3 = jnp.zeros((H_FUSED, OUT3_W), jnp.float32)
    w3 = w3.at[:H_ACTOR, :ACTION_DIM].set(aw3)
    w3 = w3.at[H_ACTOR:, LANES:LANES + 1].set(cw3)
    b3 = jnp.zeros((1, OUT3_W), jnp.float32)
    b3 = b3.at[:, :LANES].set(_NEG)
    b3 = b3.at[:, :ACTION_DIM].set(ab3)
    b3 = b3.at[:, LANES:LANES + 1].set(cb3)

    # Invariant: pad bias MUST be finite. exp underflows to exactly 0, so padded probs are 0
    # and probs*log_probs = 0*finite = 0.  Using -inf here would give 0*inf = NaN entropy.
    assert np.isfinite(_NEG) and _NEG < -1e29

    return (w1.astype(jnp.bfloat16), b1.astype(jnp.float32),
            w2.astype(jnp.bfloat16), b2.astype(jnp.float32),
            w3.astype(jnp.bfloat16), b3.astype(jnp.float32))


# ----------------------------------------------------------------------------- wrappers

def _batch_tile(B):
    """Largest tile (<=1024, multiple of 8) that still gives >=2 grid blocks, so the
    'parallel' batch axis shards across both v7x TensorCores; big tiles amortize the
    ~0.35us per-grid-step overhead on all generations."""
    if B <= 8:
        return 8
    tb = ((-(-B // 2)) + 7) // 8 * 8          # round_up8(cdiv(B, 2))
    return min(tb, 1024)


@functools.lru_cache(maxsize=None)
def _use_bf16_tanh():
    """bf16 EUP/VPU exists on v6e/v7x; keep f32 transcendentals on v5e and older."""
    try:
        kind = jax.devices()[0].device_kind.lower()
    except Exception:
        return False
    return ("v6" in kind) or ("v7" in kind)


@jax.jit
def _forward(packed_params, state, action):
    B = state.shape[0]
    tb = _batch_tile(B)
    n_blocks = pl.cdiv(B, tb)
    Bp = tb * n_blocks

    # single (B, 32) input slab: state | action | zeros  (one DMA per grid step)
    x = jnp.concatenate(
        [state.astype(jnp.float32),
         action.astype(jnp.float32)[:, None],
         jnp.zeros((B, IN_W - STATE_DIM - 1), jnp.float32)], axis=1)
    x = jnp.pad(x, ((0, Bp - B), (0, 0)))

    row2d = lambda i: (i, 0)
    const2d = lambda i: (0, 0)
    in_specs = ([pl.BlockSpec((tb, IN_W), row2d)]
                + [pl.BlockSpec(p.shape, const2d) for p in packed_params])

    kernel = functools.partial(actor_critic_kernel, tanh_bf16=_use_bf16_tanh())
    packed = pl.pallas_call(
        kernel,
        out_shape=jax.ShapeDtypeStruct((Bp, LANES), jnp.float32),
        grid=(n_blocks,),
        in_specs=in_specs,
        out_specs=pl.BlockSpec((tb, LANES), row2d),
        compiler_params=pltpu.CompilerParams(
            dimension_semantics=("parallel",),
            vmem_limit_bytes=32 * 1024 * 1024),
    )(x, *packed_params)

    probs = packed[:B, :ACTION_DIM]
    logp = packed[:B, ACTION_DIM]
    value = packed[:B, ACTION_DIM + 1]
    ent = packed[:B, ACTION_DIM + 2]
    log_probs = packed[:B, LOGP_LANE:LOGP_LANE + ACTION_DIM]
    return logp, value, ent, probs, log_probs


def evaluate(packed_params, state, action):
    """Mirrors ActorCritic.evaluate: returns (log_prob, value, entropy, probs)."""
    logp, value, ent, probs, _ = _forward(packed_params, state, action.astype(jnp.int32))
    return logp, value, ent, probs


def act(packed_params, state, key):
    """Mirrors ActorCritic.act: one kernel forward; sampling + log_prob reuse the kernel's
    exact log-softmax exported in the spare output lanes."""
    B = state.shape[0]
    dummy = jnp.zeros((B,), jnp.int32)
    _, _, _, _, log_probs = _forward(packed_params, state, dummy)
    # TODO(synk): Categorical sampling itself is plain-JAX glue (no in-kernel sampler needed).
    action = jax.random.categorical(key, log_probs, axis=-1)
    logp = jnp.take_along_axis(log_probs, action[:, None], axis=-1)[:, 0]
    return action, logp


# ----------------------------------------------------------------------------- reference

def _reference_evaluate(params, state, action, tanh_bf16):
    """Pure-JAX reference with the same bf16-operand / f32-accumulate / tanh-dtype contract."""
    aw1, ab1, aw2, ab2, aw3, ab3, cw1, cb1, cw2, cb2, cw3, cb3 = params
    cdt = jnp.bfloat16 if tanh_bf16 else jnp.float32

    def mm(x, w):
        return jax.lax.dot(x.astype(jnp.bfloat16), w.astype(jnp.bfloat16),
                           preferred_element_type=jnp.float32)

    h = jnp.tanh((mm(state, aw1) + ab1).astype(cdt))
    h = jnp.tanh((mm(h, aw2) + ab2).astype(cdt))
    logits = mm(h, aw3) + ab3
    probs = jax.nn.softmax(logits, axis=-1)
    logps = jax.nn.log_softmax(logits, axis=-1)
    logp = jnp.take_along_axis(logps, action[:, None], axis=-1)[:, 0]
    ent = -jnp.sum(probs * logps, axis=-1)
    c = jnp.tanh((mm(state, cw1) + cb1).astype(cdt))
    c = jnp.tanh((mm(c, cw2) + cb2).astype(cdt))
    val = (mm(c, cw3) + cb3)[:, 0]
    return logp, val, ent, probs


if __name__ == "__main__":
    key = jax.random.PRNGKey(0)
    k_param, k_state, k_act, k_sample = jax.random.split(key, 4)

    B = 24  # small; non-multiple of the tile -> exercises padding + a 2-block grid
    state = jax.random.normal(k_state, (B, STATE_DIM), jnp.float32)
    action = jax.random.randint(k_act, (B,), 0, ACTION_DIM, jnp.int32)

    raw_params = init_params(k_param)
    params = prepare_params(raw_params)

    logp, value, entropy, probs = evaluate(params, state, action)
    jax.block_until_ready((logp, value, entropy, probs))

    ref_logp, ref_val, ref_ent, ref_probs = _reference_evaluate(
        raw_params, state, action, _use_bf16_tanh())
    assert jnp.allclose(logp, ref_logp, atol=1e-2, rtol=1e-2)
    assert jnp.allclose(value, ref_val, atol=1e-2, rtol=1e-2)
    assert jnp.allclose(entropy, ref_ent, atol=1e-2, rtol=1e-2)
    assert jnp.allclose(probs, ref_probs, atol=1e-2, rtol=1e-2)
    assert jnp.allclose(jnp.sum(probs, axis=-1), 1.0, atol=2e-3)

    a, a_logp = act(params, state, k_sample)
    jax.block_until_ready((a, a_logp))
    assert a.shape == (B,) and a_logp.shape == (B,)
    assert bool(jnp.all((a >= 0) & (a < ACTION_DIM)))

    print("KERNEL_OK")
</pallas_src>

<mosaic_0001>
module attributes {stable_mosaic.version = 11 : i64} {
  func.func @actor_critic_kernel(%arg0: i32, %arg1: memref<16x32xf32, #tpu.memory_space<vmem>>, %arg2: memref<32x384xbf16, #tpu.memory_space<vmem>>, %arg3: memref<1x384xf32, #tpu.memory_space<vmem>>, %arg4: memref<384x384xbf16, #tpu.memory_space<vmem>>, %arg5: memref<1x384xf32, #tpu.memory_space<vmem>>, %arg6: memref<384x256xbf16, #tpu.memory_space<vmem>>, %arg7: memref<1x256xf32, #tpu.memory_space<vmem>>, %arg8: memref<16x128xf32, #tpu.memory_space<vmem>>) attributes {dimension_semantics = [#tpu.dimension_semantics<parallel>], iteration_bounds = array<i64: 2>, scalar_prefetch = 0 : i64, scratch_operands = 0 : i64, tpu.core_type = #tpu.core_type<tc>, window_params = [{transform_indices = @transform_0, window_bounds = array<i64: 16, 32>}, {pipeline_mode = #tpu.pipeline_mode<synchronous>, transform_indices = @transform_1, window_bounds = array<i64: 32, 384>}, {pipeline_mode = #tpu.pipeline_mode<synchronous>, transform_indices = @transform_2, window_bounds = array<i64: 1, 384>}, {pipeline_mode = #tpu.pipeline_mode<synchronous>, transform_indices = @transform_3, window_bounds = array<i64: 384, 384>}, {pipeline_mode = #tpu.pipeline_mode<synchronous>, transform_indices = @transform_4, window_bounds = array<i64: 1, 384>}, {pipeline_mode = #tpu.pipeline_mode<synchronous>, transform_indices = @transform_5, window_bounds = array<i64: 384, 256>}, {pipeline_mode = #tpu.pipeline_mode<synchronous>, transform_indices = @transform_6, window_bounds = array<i64: 1, 256>}, {transform_indices = @transform_7, window_bounds = array<i64: 16, 128>}]} {
    %c0 = arith.constant 0 : index
    %c0_0 = arith.constant 0 : index
    %0 = vector.load %arg1[%c0, %c0_0] : memref<16x32xf32, #tpu.memory_space<vmem>>, vector<16x32xf32>
    %1 = tpu.iota {dimensions = array<i32: 1>} : vector<16x32xi32>
    %c16_i32 = arith.constant 16 : i32
    %2 = vector.broadcast %c16_i32 : i32 to vector<16x32xi32>
    %3 = arith.cmpi eq, %1, %2 : vector<16x32xi32>
    %cst = arith.constant 0.000000e+00 : f32
    %4 = vector.broadcast %cst : f32 to vector<16x32xf32>
    %5 = arith.select %3, %0, %4 : vector<16x32xi1>, vector<16x32xf32>
    %cst_1 = arith.constant dense<0.000000e+00> : vector<16xf32>
    %6 = vector.multi_reduction <add>, %5, %cst_1 [1] : vector<16x32xf32> to vector<16xf32>
    %7 = vector.shape_cast %6 : vector<16xf32> to vector<16x1xf32>
    %8 = arith.fptosi %7 : vector<16x1xf32> to vector<16x1xi32>
    %9 = arith.truncf %0 : vector<16x32xf32> to vector<16x32xbf16>
    %c0_2 = arith.constant 0 : index
    %c0_3 = arith.constant 0 : index
    %10 = vector.load %arg2[%c0_2, %c0_3] : memref<32x384xbf16, #tpu.memory_space<vmem>>, vector<32x384xbf16>
    %cst_4 = arith.constant dense<0.000000e+00> : vector<16x384xf32>
    %11 = tpu.matmul %9, %10, %cst_4 {dimension_numbers = #tpu.dot_dimension_numbers<[1], [0], [0], [1], [0, 0, 1, 1], [], []>} : vector<16x32xbf16>, vector<32x384xbf16>, vector<16x384xf32> -> vector<16x384xf32>
    %c0_5 = arith.constant 0 : index
    %c0_6 = arith.constant 0 : index
    %12 = vector.load %arg3[%c0_5, %c0_6] : memref<1x384xf32, #tpu.memory_space<vmem>>, vector<1x384xf32>
    %13 = vector.broadcast %12 : vector<1x384xf32> to vector<16x384xf32>
    %14 = arith.addf %11, %13 : vector<16x384xf32>
    %15 = math.tanh %14 : vector<16x384xf32>
    %16 = arith.truncf %15 : vector<16x384xf32> to vector<16x384xbf16>
    %c0_7 = arith.constant 0 : index
    %c0_8 = arith.constant 0 : index
    %17 = vector.load %arg4[%c0_7, %c0_8] : memref<384x384xbf16, #tpu.memory_space<vmem>>, vector<384x384xbf16>
    %cst_9 = arith.constant dense<0.000000e+00> : vector<16x384xf32>
    %18 = tpu.matmul %16, %17, %cst_9 {dimension_numbers = #tpu.dot_dimension_numbers<[1], [0], [0], [1], [0, 0, 1, 1], [], []>} : vector<16x384xbf16>, vector<384x384xbf16>, vector<16x384xf32> -> vector<16x384xf32>
    %c0_10 = arith.constant 0 : index
    %c0_11 = arith.constant 0 : index
    %19 = vector.load %arg5[%c0_10, %c0_11] : memref<1x384xf32, #tpu.memory_space<vmem>>, vector<1x384xf32>
    %20 = vector.broadcast %19 : vector<1x384xf32> to vector<16x384xf32>
    %21 = arith.addf %18, %20 : vector<16x384xf32>
    %22 = math.tanh %21 : vector<16x384xf32>
    %23 = arith.truncf %22 : vector<16x384xf32> to vector<16x384xbf16>
    %c0_12 = arith.constant 0 : index
    %c0_13 = arith.constant 0 : index
    %24 = vector.load %arg6[%c0_12, %c0_13] : memref<384x256xbf16, #tpu.memory_space<vmem>>, vector<384x256xbf16>
    %cst_14 = arith.constant dense<0.000000e+00> : vector<16x256xf32>
    %25 = tpu.matmul %23, %24, %cst_14 {dimension_numbers = #tpu.dot_dimension_numbers<[1], [0], [0], [1], [0, 0, 1, 1], [], []>} : vector<16x384xbf16>, vector<384x256xbf16>, vector<16x256xf32> -> vector<16x256xf32>
    %c0_15 = arith.constant 0 : index
    %c0_16 = arith.constant 0 : index
    %26 = vector.load %arg7[%c0_15, %c0_16] : memref<1x256xf32, #tpu.memory_space<vmem>>, vector<1x256xf32>
    %27 = vector.broadcast %26 : vector<1x256xf32> to vector<16x256xf32>
    %28 = arith.addf %25, %27 : vector<16x256xf32>
    %29 = vector.extract_strided_slice %28 {offsets = [0, 0], sizes = [16, 128], strides = [1, 1]} : vector<16x256xf32> to vector<16x128xf32>
    %30 = vector.extract_strided_slice %28 {offsets = [0, 128], sizes = [16, 128], strides = [1, 1]} : vector<16x256xf32> to vector<16x128xf32>
    %cst_17 = arith.constant dense<0.000000e+00> : vector<16xf32>
    %31 = vector.multi_reduction <add>, %30, %cst_17 [1] : vector<16x128xf32> to vector<16xf32>
    %32 = vector.shape_cast %31 : vector<16xf32> to vector<16x1xf32>
    %cst_18 = arith.constant dense<0xFF800000> : vector<16xf32>
    %33 = vector.multi_reduction <maximumf>, %29, %cst_18 [1] : vector<16x128xf32> to vector<16xf32>
    %34 = vector.shape_cast %33 : vector<16xf32> to vector<16x1xf32>
    %35 = vector.broadcast %34 : vector<16x1xf32> to vector<16x128xf32>
    %36 = arith.subf %29, %35 : vector<16x128xf32>
    %37 = math.exp %36 : vector<16x128xf32>
    %cst_19 = arith.constant dense<0.000000e+00> : vector<16xf32>
    %38 = vector.multi_reduction <add>, %37, %cst_19 [1] : vector<16x128xf32> to vector<16xf32>
    %39 = vector.shape_cast %38 : vector<16xf32> to vector<16x1xf32>
    %40 = vector.broadcast %39 : vector<16x1xf32> to vector<16x128xf32>
    %41 = arith.divf %37, %40 : vector<16x128xf32>
    %42 = vector.broadcast %34 : vector<16x1xf32> to vector<16x128xf32>
    %43 = arith.subf %29, %42 : vector<16x128xf32>
    %44 = math.log %39 : vector<16x1xf32>
    %45 = vector.broadcast %44 : vector<16x1xf32> to vector<16x128xf32>
    %46 = arith.subf %43, %45 : vector<16x128xf32>
    %47 = tpu.iota {dimensions = array<i32: 1>} : vector<16x128xi32>
    %48 = vector.broadcast %8 : vector<16x1xi32> to vector<16x128xi32>
    %49 = arith.cmpi eq, %47, %48 : vector<16x128xi32>
    %cst_20 = arith.constant 0.000000e+00 : f32
    %50 = vector.broadcast %cst_20 : f32 to vector<16x128xf32>
    %51 = arith.select %49, %46, %50 : vector<16x128xi1>, vector<16x128xf32>
    %cst_21 = arith.constant dense<0.000000e+00> : vector<16xf32>
    %52 = vector.multi_reduction <add>, %51, %cst_21 [1] : vector<16x128xf32> to vector<16xf32>
    %53 = vector.shape_cast %52 : vector<16xf32> to vector<16x1xf32>
    %54 = arith.mulf %41, %46 : vector<16x128xf32>
    %cst_22 = arith.constant dense<0.000000e+00> : vector<16xf32>
    %55 = vector.multi_reduction <add>, %54, %cst_22 [1] : vector<16x128xf32> to vector<16xf32>
    %56 = vector.shape_cast %55 : vector<16xf32> to vector<16x1xf32>
    %cst_23 = arith.constant 0.000000e+00 : f32
    %57 = vector.broadcast %cst_23 : f32 to vector<16x1xf32>
    %58 = arith.subf %57, %56 : vector<16x1xf32>
    %c16_i32_24 = arith.constant 16 : i32
    %59 = tpu.dynamic_rotate %46 by %c16_i32_24 dim 1 : vector<16x128xf32>, i32 -> vector<16x128xf32>
    %c8_i32 = arith.constant 8 : i32
    %60 = vector.broadcast %c8_i32 : i32 to vector<16x128xi32>
    %61 = arith.cmpi slt, %47, %60 : vector<16x128xi32>
    %62 = arith.extui %61 : vector<16x128xi1> to vector<16x128xi32>
    %63 = arith.sitofp %62 : vector<16x128xi32> to vector<16x128xf32>
    %64 = arith.mulf %41, %63 : vector<16x128xf32>
    %c8_i32_25 = arith.constant 8 : i32
    %65 = vector.broadcast %c8_i32_25 : i32 to vector<16x128xi32>
    %66 = arith.cmpi eq, %47, %65 : vector<16x128xi32>
    %67 = arith.extui %66 : vector<16x128xi1> to vector<16x128xi32>
    %68 = arith.sitofp %67 : vector<16x128xi32> to vector<16x128xf32>
    %69 = vector.broadcast %53 : vector<16x1xf32> to vector<16x128xf32>
    %70 = arith.mulf %69, %68 : vector<16x128xf32>
    %71 = arith.addf %64, %70 : vector<16x128xf32>
    %c9_i32 = arith.constant 9 : i32
    %72 = vector.broadcast %c9_i32 : i32 to vector<16x128xi32>
    %73 = arith.cmpi eq, %47, %72 : vector<16x128xi32>
    %74 = arith.extui %73 : vector<16x128xi1> to vector<16x128xi32>
    %75 = arith.sitofp %74 : vector<16x128xi32> to vector<16x128xf32>
    %76 = vector.broadcast %32 : vector<16x1xf32> to vector<16x128xf32>
    %77 = arith.mulf %76, %75 : vector<16x128xf32>
    %78 = arith.addf %71, %77 : vector<16x128xf32>
    %c10_i32 = arith.constant 10 : i32
    %79 = vector.broadcast %c10_i32 : i32 to vector<16x128xi32>
    %80 = arith.cmpi eq, %47, %79 : vector<16x128xi32>
    %81 = arith.extui %80 : vector<16x128xi1> to vector<16x128xi32>
    %82 = arith.sitofp %81 : vector<16x128xi32> to vector<16x128xf32>
    %83 = vector.broadcast %58 : vector<16x1xf32> to vector<16x128xf32>
    %84 = arith.mulf %83, %82 : vector<16x128xf32>
    %85 = arith.addf %78, %84 : vector<16x128xf32>
    %c16_i32_26 = arith.constant 16 : i32
    %86 = vector.broadcast %c16_i32_26 : i32 to vector<16x128xi32>
    %87 = arith.cmpi sge, %47, %86 : vector<16x128xi32>
    %c24_i32 = arith.constant 24 : i32
    %88 = vector.broadcast %c24_i32 : i32 to vector<16x128xi32>
    %89 = arith.cmpi slt, %47, %88 : vector<16x128xi32>
    %90 = arith.andi %87, %89 : vector<16x128xi1>
    %91 = arith.extui %90 : vector<16x128xi1> to vector<16x128xi32>
    %92 = arith.sitofp %91 : vector<16x128xi32> to vector<16x128xf32>
    %93 = arith.mulf %59, %92 : vector<16x128xf32>
    %94 = arith.addf %85, %93 : vector<16x128xf32>
    %c0_27 = arith.constant 0 : index
    %c0_28 = arith.constant 0 : index
    %95 = vector.load %arg8[%c0_27, %c0_28] : memref<16x128xf32, #tpu.memory_space<vmem>>, vector<16x128xf32>
    tpu.vector_store %arg8[%c0_27, %c0_28], %94 {strides = array<i32>} : memref<16x128xf32, #tpu.memory_space<vmem>>, vector<16x128xf32>,
    return
  }
  func.func @transform_0(%arg0: i32) -> (i32, i32) {
    %c0_i32 = arith.constant 0 : i32
    %c0_i32_0 = arith.constant 0 : i32
    return %arg0, %c0_i32 : i32, i32
  }
  func.func @transform_1(%arg0: i32) -> (i32, i32) {
    %c0_i32 = arith.constant 0 : i32
    %c0_i32_0 = arith.constant 0 : i32
    %c0_i32_1 = arith.constant 0 : i32
    return %c0_i32, %c0_i32_0 : i32, i32
  }
  func.func @transform_2(%arg0: i32) -> (i32, i32) {
    %c0_i32 = arith.constant 0 : i32
    %c0_i32_0 = arith.constant 0 : i32
    %c0_i32_1 = arith.constant 0 : i32
    return %c0_i32, %c0_i32_0 : i32, i32
  }
  func.func @transform_3(%arg0: i32) -> (i32, i32) {
    %c0_i32 = arith.constant 0 : i32
    %c0_i32_0 = arith.constant 0 : i32
    %c0_i32_1 = arith.constant 0 : i32
    return %c0_i32, %c0_i32_0 : i32, i32
  }
  func.func @transform_4(%arg0: i32) -> (i32, i32) {
    %c0_i32 = arith.constant 0 : i32
    %c0_i32_0 = arith.constant 0 : i32
    %c0_i32_1 = arith.constant 0 : i32
    return %c0_i32, %c0_i32_0 : i32, i32
  }
  func.func @transform_5(%arg0: i32) -> (i32, i32) {
    %c0_i32 = arith.constant 0 : i32
    %c0_i32_0 = arith.constant 0 : i32
    %c0_i32_1 = arith.constant 0 : i32
    return %c0_i32, %c0_i32_0 : i32, i32
  }
  func.func @transform_6(%arg0: i32) -> (i32, i32) {
    %c0_i32 = arith.constant 0 : i32
    %c0_i32_0 = arith.constant 0 : i32
    %c0_i32_1 = arith.constant 0 : i32
    return %c0_i32, %c0_i32_0 : i32, i32
  }
  func.func @transform_7(%arg0: i32) -> (i32, i32) {
    %c0_i32 = arith.constant 0 : i32
    %c0_i32_0 = arith.constant 0 : i32
    return %arg0, %c0_i32 : i32, i32
  }
}

</mosaic_0001>

<llo_original>
// kernel: _forward.1
$region0: #{_forward.1}
  #allocation0 [shape = 'u32[]', space=smem, size = 0x4, offset = 0x4, fixed_abs, tag = 'smem constant byte address 0x4 - core index']
  #allocation1 [shape = 'u32[144,128]{1,0:T(1,128)}', space=vmem, size = 0x12000, scoped, tag = 'internal scratch']
  %s0 = inlined_call_operand.vmem [shape: f32[32,32], index: 0, kind: input, shape index: {}]
  %s1 = inlined_call_operand.vmem [shape: bf16[32,384], index: 1, kind: input, shape index: {}]
  %s2 = inlined_call_operand.vmem [shape: f32[1,384], index: 2, kind: input, shape index: {}]
  %s3 = inlined_call_operand.hbm [shape: bf16[384,384], index: 3, kind: input, shape index: {}]
  %s4 = inlined_call_operand.vmem [shape: f32[1,384], index: 4, kind: input, shape index: {}]
  %s5 = inlined_call_operand.hbm [shape: bf16[384,256], index: 5, kind: input, shape index: {}]
  %s6 = inlined_call_operand.vmem [shape: f32[1,256], index: 6, kind: input, shape index: {}]
  %s7 = inlined_call_operand.vmem [shape: f32[32,128], index: 7, kind: output, shape index: {}]
  %s8 = sld [smem:[#allocation0]]
  $region69: #{_forward.1} parent=0
    _
  %s10 = ssub.s32 1, %s8
  %s11 = scalar_select 0, %s10, %s8
  $region1: #{_forward.1} parent=0
    #allocation2 [shape = 'u8[294912]{0}', space=vmem, size = 0x48000, scoped, tag = 'input window, operand 3, single buffered']
    #allocation3 [shape = 's32[2]{0}', space=sflag, size = 0x8, scoped, tag = 'scoped memory for _forward.1']
    #allocation4 [shape = 'u8[196608]{0}', space=vmem, size = 0x30000, scoped, tag = 'input window, operand 5, single buffered']
    #allocation5 [shape = 's32[1]{0}', space=sflag, size = 0x4, scoped, tag = 'scoped memory for _forward.1']
    %12 = vsyncpa [#allocation3], 0
    %13 = vsyncpa [#allocation5], 0
    loop: start=0, step=1, limit=4
    $region2: #{_forward.1} parent=1 // loop_pre_header
      _
    $region3: #{_forward.1} parent=1 // loop_header
      %s15 = sphi 0, %s19
      %p16 = scmp.ge.s32.totalorder %s15, 4
      %s25 = sphi 0, %s27
      %s28 = sphi 0, %s25
      %s29 = sphi 0, %s28
      %s45 = sphi 0, %s29
      %s49 = sphi 0, %s49
      %s51 = sphi 0, %s49
      %s52 = sphi 0, %s51
      %s66 = sphi 0, %s52
      %s70 = sphi 0, %s70
      %s72 = sphi 0, %s70
      %s73 = sphi 0, %s72
      %s87 = sphi 0, %s73
      %s91 = sphi 0, %s91
      %s93 = sphi 0, %s91
      %s94 = sphi 0, %s93
      %s108 = sphi 0, %s94
      %s112 = sphi 0, %s112
      %s114 = sphi 0, %s112
      %s115 = sphi 0, %s114
      %s129 = sphi 0, %s115
      %s133 = sphi 0, %s133
      %s135 = sphi 0, %s133
      %s136 = sphi 0, %s135
      %s150 = sphi 0, %s136
      %s154 = sphi 0, %s154
      %s156 = sphi 0, %s154
      %s157 = sphi 0, %s156
      %s171 = sphi 0, %s157
      %s177 = sphi 0, %s179
      %s180 = sphi 0, %s177
      %s181 = sphi 0, %s180
      %s197 = sphi 0, %s181
    $region4: #{_forward.1} parent=1 // loop_header_branch
      %18 = sbr.rel (%p16) target = $region8
    $region5: #{_forward.1} parent=1 // loop_body
      %s20 = ssub.s32 %s15, 1
      %s21 = ssub.s32 %s15, 2
      %s22 = sadd.s32 %s15, 1
      %s23 = ssub.s32 %s15, %s22
      %p24 = scmp.eq.s32.totalorder %s23, 0
      %s26 = sadd.s32 %s25, 1
      %s27 = scalar_select %p24, %s25, %s26
      %p30 = pneg %p24
      %p31 = scmp.eq.s32.totalorder %s15, 1
      %p32 = por %p30, %p31
      %p33 = scmp.ne.s32.totalorder %s25, %s28
      %p34 = scmp.eq.s32.totalorder %s15, 0
      %p35 = por %p33, %p34
      %p36 = scmp.ne.s32.totalorder %s25, %s28
      %p37 = scmp.eq.s32.totalorder %s20, 1
      %p38 = por %p36, %p37
      %p39 = scmp.ne.s32.totalorder %s28, %s29
      %p40 = scmp.eq.s32.totalorder %s20, 0
      %p41 = por %p39, %p40
      %p42 = scmp.ne.s32.totalorder %s28, %s29
      %p43 = scmp.eq.s32.totalorder %s21, 1
      %p44 = por %p42, %p43
      %p46 = scmp.ne.s32.totalorder %s29, %s45
      %p47 = scmp.eq.s32.totalorder %s21, 0
      %p48 = por %p46, %p47
      %s50 = sadd.s32 %s49, 1
      %p53 = scmp.eq.s32.totalorder %s15, 1
      %p54 = scmp.ne.s32.totalorder %s49, %s51
      %p55 = scmp.eq.s32.totalorder %s15, 0
      %p56 = por %p54, %p55
      %p57 = scmp.ne.s32.totalorder %s49, %s51
      %p58 = scmp.eq.s32.totalorder %s20, 1
      %p59 = por %p57, %p58
      %p60 = scmp.ne.s32.totalorder %s51, %s52
      %p61 = scmp.eq.s32.totalorder %s20, 0
      %p62 = por %p60, %p61
      %p63 = scmp.ne.s32.totalorder %s51, %s52
      %p64 = scmp.eq.s32.totalorder %s21, 1
      %p65 = por %p63, %p64
      %p67 = scmp.ne.s32.totalorder %s52, %s66
      %p68 = scmp.eq.s32.totalorder %s21, 0
      %p69 = por %p67, %p68
      %s71 = sadd.s32 %s70, 1
      %p74 = scmp.eq.s32.totalorder %s15, 1
      %p75 = scmp.ne.s32.totalorder %s70, %s72
      %p76 = scmp.eq.s32.totalorder %s15, 0
      %p77 = por %p75, %p76
      %p78 = scmp.ne.s32.totalorder %s70, %s72
      %p79 = scmp.eq.s32.totalorder %s20, 1
      %p80 = por %p78, %p79
      %p81 = scmp.ne.s32.totalorder %s72, %s73
      %p82 = scmp.eq.s32.totalorder %s20, 0
      %p83 = por %p81, %p82
      %p84 = scmp.ne.s32.totalorder %s72, %s73
      %p85 = scmp.eq.s32.totalorder %s21, 1
      %p86 = por %p84, %p85
      %p88 = scmp.ne.s32.totalorder %s73, %s87
      %p89 = scmp.eq.s32.totalorder %s21, 0
      %p90 = por %p88, %p89
      %s92 = sadd.s32 %s91, 1
      %p95 = scmp.eq.s32.totalorder %s15, 1
      %p96 = scmp.ne.s32.totalorder %s91, %s93
      %p97 = scmp.eq.s32.totalorder %s15, 0
      %p98 = por %p96, %p97
      %p99 = scmp.ne.s32.totalorder %s91, %s93
      %p100 = scmp.eq.s32.totalorder %s20, 1
      %p101 = por %p99, %p100
      %p102 = scmp.ne.s32.totalorder %s93, %s94
      %p103 = scmp.eq.s32.totalorder %s20, 0
      %p104 = por %p102, %p103
      %p105 = scmp.ne.s32.totalorder %s93, %s94
      %p106 = scmp.eq.s32.totalorder %s21, 1
      %p107 = por %p105, %p106
      %p109 = scmp.ne.s32.totalorder %s94, %s108
      %p110 = scmp.eq.s32.totalorder %s21, 0
      %p111 = por %p109, %p110
      %s113 = sadd.s32 %s112, 1
      %p116 = scmp.eq.s32.totalorder %s15, 1
      %p117 = scmp.ne.s32.totalorder %s112, %s114
      %p118 = scmp.eq.s32.totalorder %s15, 0
      %p119 = por %p117, %p118
      %p120 = scmp.ne.s32.totalorder %s112, %s114
      %p121 = scmp.eq.s32.totalorder %s20, 1
      %p122 = por %p120, %p121
      %p123 = scmp.ne.s32.totalorder %s114, %s115
      %p124 = scmp.eq.s32.totalorder %s20, 0
      %p125 = por %p123, %p124
      %p126 = scmp.ne.s32.totalorder %s114, %s115
      %p127 = scmp.eq.s32.totalorder %s21, 1
      %p128 = por %p126, %p127
      %p130 = scmp.ne.s32.totalorder %s115, %s129
      %p131 = scmp.eq.s32.totalorder %s21, 0
      %p132 = por %p130, %p131
      %s134 = sadd.s32 %s133, 1
      %p137 = scmp.eq.s32.totalorder %s15, 1
      %p138 = scmp.ne.s32.totalorder %s133, %s135
      %p139 = scmp.eq.s32.totalorder %s15, 0
      %p140 = por %p138, %p139
      %p141 = scmp.ne.s32.totalorder %s133, %s135
      %p142 = scmp.eq.s32.totalorder %s20, 1
      %p143 = por %p141, %p142
      %p144 = scmp.ne.s32.totalorder %s135, %s136
      %p145 = scmp.eq.s32.totalorder %s20, 0
      %p146 = por %p144, %p145
      %p147 = scmp.ne.s32.totalorder %s135, %s136
      %p148 = scmp.eq.s32.totalorder %s21, 1
      %p149 = por %p147, %p148
      %p151 = scmp.ne.s32.totalorder %s136, %s150
      %p152 = scmp.eq.s32.totalorder %s21, 0
      %p153 = por %p151, %p152
      %s155 = sadd.s32 %s154, 1
      %p158 = scmp.eq.s32.totalorder %s15, 1
      %p159 = scmp.ne.s32.totalorder %s154, %s156
      %p160 = scmp.eq.s32.totalorder %s15, 0
      %p161 = por %p159, %p160
      %p162 = scmp.ne.s32.totalorder %s154, %s156
      %p163 = scmp.eq.s32.totalorder %s20, 1
      %p164 = por %p162, %p163
      %p165 = scmp.ne.s32.totalorder %s156, %s157
      %p166 = scmp.eq.s32.totalorder %s20, 0
      %p167 = por %p165, %p166
      %p168 = scmp.ne.s32.totalorder %s156, %s157
      %p169 = scmp.eq.s32.totalorder %s21, 1
      %p170 = por %p168, %p169
      %p172 = scmp.ne.s32.totalorder %s157, %s171
      %p173 = scmp.eq.s32.totalorder %s21, 0
      %p174 = por %p172, %p173
      %s175 = ssub.s32 %s15, %s22
      %p176 = scmp.eq.s32.totalorder %s175, 0
      %s178 = sadd.s32 %s177, 1
      %s179 = scalar_select %p176, %s177, %s178
      %p182 = pneg %p176
      %p183 = scmp.eq.s32.totalorder %s15, 1
      %p184 = por %p182, %p183
      %p185 = scmp.ne.s32.totalorder %s177, %s180
      %p186 = scmp.eq.s32.totalorder %s15, 0
      %p187 = por %p185, %p186
      %p188 = scmp.ne.s32.totalorder %s177, %s180
      %p189 = scmp.eq.s32.totalorder %s20, 1
      %p190 = por %p188, %p189
      %p191 = scmp.ne.s32.totalorder %s180, %s181
      %p192 = scmp.eq.s32.totalorder %s20, 0
      %p193 = por %p191, %p192
      %p194 = scmp.ne.s32.totalorder %s180, %s181
      %p195 = scmp.eq.s32.totalorder %s21, 1
      %p196 = por %p194, %p195
      %p198 = scmp.ne.s32.totalorder %s181, %s197
      %p199 = scmp.eq.s32.totalorder %s21, 0
      %p200 = por %p198, %p199
      %p201 = scmp.le.s32.totalorder 1, %s15
      %p202 = scmp.lt.s32.totalorder %s15, 3
      %p203 = pnand %p201, %p202
      %p204 = pneg %p203
      // Predicated region
      $region9: #{_forward.1} parent=5 // pred_check
        _
      $region10: #{_forward.1} parent=5 // pred_check_branch
        %206 = sbr.rel (%p203) target = $region12
      $region11: #{_forward.1} parent=5 // pred_region
        %s207 = ssub.s32 %s15, 1
        // Predicated region
        $region13: #{_forward.1} parent=11 // pred_check
          %p208 = pneg %p62
        $region14: #{_forward.1} parent=11 // pred_check_branch
          %210 = sbr.rel (%p208) target = $region16
        $region15: #{_forward.1} parent=11 // pred_region
          _
        $region16: #{_forward.1} parent=11 // pred_fallthru
          _
        // Predicated region
        $region17: #{_forward.1} parent=11 // pred_check
          %p211 = pneg %p83
        $region18: #{_forward.1} parent=11 // pred_check_branch
          %213 = sbr.rel (%p211) target = $region20
        $region19: #{_forward.1} parent=11 // pred_region
          _
        $region20: #{_forward.1} parent=11 // pred_fallthru
          _
        // Predicated region
        $region21: #{_forward.1} parent=11 // pred_check
          %p214 = pneg %p104
        $region22: #{_forward.1} parent=11 // pred_check_branch
          %216 = sbr.rel (%p214) target = $region24
        $region23: #{_forward.1} parent=11 // pred_region
          %s218 = ssub.s32 9216, 9216
          %219 = vsyncadd [#allocation3], %s218
          %s220 = sshll.u32 [#allocation2], 4
          %s221 = int_to_ptr.vmem [resolvable:$true] %s220
          %226 = dma.hbm_to_vmem [thread:$0]  %s3, 9216, %s221, [#allocation3], 192, 192, 12
        $region24: #{_forward.1} parent=11 // pred_fallthru
          _
        // Predicated region
        $region25: #{_forward.1} parent=11 // pred_check
          %p227 = pneg %p125
        $region26: #{_forward.1} parent=11 // pred_check_branch
          %229 = sbr.rel (%p227) target = $region28
        $region27: #{_forward.1} parent=11 // pred_region
          _
        $region28: #{_forward.1} parent=11 // pred_fallthru
          _
        // Predicated region
        $region29: #{_forward.1} parent=11 // pred_check
          %p230 = pneg %p146
        $region30: #{_forward.1} parent=11 // pred_check_branch
          %232 = sbr.rel (%p230) target = $region32
        $region31: #{_forward.1} parent=11 // pred_region
          %s234 = ssub.s32 6144, 6144
          %235 = vsyncadd [#allocation5], %s234
          %s236 = sshll.u32 [#allocation4], 4
          %s237 = int_to_ptr.vmem [resolvable:$true] %s236
          %242 = dma.hbm_to_vmem [thread:$0]  %s5, 6144, %s237, [#allocation5], 128, 128, 8
        $region32: #{_forward.1} parent=11 // pred_fallthru
          _
        // Predicated region
        $region33: #{_forward.1} parent=11 // pred_check
          %p243 = pneg %p167
        $region34: #{_forward.1} parent=11 // pred_check_branch
          %245 = sbr.rel (%p243) target = $region36
        $region35: #{_forward.1} parent=11 // pred_region
          _
        $region36: #{_forward.1} parent=11 // pred_fallthru
          _
      $region12: #{_forward.1} parent=5 // pred_fallthru
        _
      %p246 = scmp.lt.s32.totalorder %s15, 2
      // Predicated region
      $region37: #{_forward.1} parent=5 // pred_check
        %p247 = pneg %p246
      $region38: #{_forward.1} parent=5 // pred_check_branch
        %249 = sbr.rel (%p247) target = $region40
      $region39: #{_forward.1} parent=5 // pred_region
        // Predicated region
        $region41: #{_forward.1} parent=39 // pred_check
          %p250 = pneg %p35
        $region42: #{_forward.1} parent=39 // pred_check_branch
          %252 = sbr.rel (%p250) target = $region44
        $region43: #{_forward.1} parent=39 // pred_region
          %s253 = smul.u32 2, %s15
          %p254 = scmp.lt.s32.totalorder %s253, 3
          %s255 = scalar_select %p254, %s253, 3
          %s256 = smul.addr %s255, 8
          %s257 = scalar_lea.vmem %s0, %s256
          %s258 = smul.u32 2, %s15
        $region44: #{_forward.1} parent=39 // pred_fallthru
          _
      $region40: #{_forward.1} parent=5 // pred_fallthru
        _
      %p259 = scmp.le.s32.totalorder 1, %s15
      %p260 = scmp.lt.s32.totalorder %s15, 3
      %p261 = pnand %p259, %p260
      %p262 = pneg %p261
      // Predicated region
      $region45: #{_forward.1} parent=5 // pred_check
        _
      $region46: #{_forward.1} parent=5 // pred_check_branch
        %264 = sbr.rel (%p261) target = $region48
      $region47: #{_forward.1} parent=5 // pred_region
        %s265 = ssub.s32 %s15, 1
        // Predicated region
        $region49: #{_forward.1} parent=47 // pred_check
          %p266 = pneg %p104
        $region50: #{_forward.1} parent=47 // pred_check_branch
          %268 = sbr.rel (%p266) target = $region52
        $region51: #{_forward.1} parent=47 // pred_region
          %269 = dma.done [#allocation3], 9216
        $region52: #{_forward.1} parent=47 // pred_fallthru
          _
        // Predicated region
        $region53: #{_forward.1} parent=47 // pred_check
          %p270 = pneg %p146
        $region54: #{_forward.1} parent=47 // pred_check_branch
          %272 = sbr.rel (%p270) target = $region56
        $region55: #{_forward.1} parent=47 // pred_region
          %273 = dma.done [#allocation5], 6144
        $region56: #{_forward.1} parent=47 // pred_fallthru
          _
        %s274 = smul.u32 2, %s20
        %p275 = scmp.lt.s32.totalorder %s274, 3
        %s276 = scalar_select %p275, %s274, 3
        %s277 = smul.addr %s276, 8
        %s278 = scalar_lea.vmem %s0, %s277
        %p279 = pneg %p41
        %p280 = pneg %p38
        %p281 = pneg %p62
        %p282 = pneg %p59
        %p283 = pneg %p83
        %p284 = pneg %p80
        %p285 = pneg %p104
        %p286 = pneg %p101
        %p287 = pneg %p125
        %p288 = pneg %p122
        %p289 = pneg %p146
        %p290 = pneg %p143
        %p291 = pneg %p167
        %p292 = pneg %p164
        %p293 = pneg %p193
        %p294 = pneg %p190
        %s295 = smul.u32 2, %s20
        %p296 = scmp.lt.s32.totalorder %s295, 3
        %s297 = scalar_select %p296, %s295, 3
        %s298 = smul.addr %s297, 8
        %s299 = scalar_lea.vmem %s7, %s298
        %s300 = smul.u32 2, %s20
        %p301 = scmp.lt.s32.totalorder %s300, 3
        %s302 = scalar_select %p301, %s300, 3
        %s303 = smul.addr %s302, 8
        %s304 = scalar_lea.vmem %s0, %s303
        %s305 = smul.u32 2, %s20
        %s306 = smul.u32 2, %s20
        %p307 = scmp.lt.s32.totalorder %s306, 3
        %s308 = scalar_select %p307, %s306, 3
        %s309 = smul.addr %s308, 8
        %s310 = scalar_lea.vmem %s7, %s309
        %s311 = smul.u32 2, %s20
        %v313 = vld [vmem:[%s304] sm:$0xff]
        %v314 = vld [vmem:[%s304 + $0x8] sm:$0xff]
        %v315 = vlaneseq
        %v316 = vand.u32 %v315, 127
        %vm317 = vcmp.eq.s32.totalorder %v316, 16
        %v318 = vsel %vm317, %v313, 0.0
        %v319 = vsel %vm317, %v314, 0.0
        %vm320 = vcmask 261120
        %v321 = vsel %vm320, %v318, 0.0
        %322 = vadd.xlane.f32.xlu0 %v321
        %v323 = vpop.xlane.xlu0 %322
        %v324 = vsel %vm320, %v319, 0.0
        %325 = vadd.xlane.f32.xlu0 %v324
        %v326 = vpop.xlane.xlu0 %325
        %v327 = vcvt.f32.s32.to.zero.pseudo %v323
        %v328 = vcvt.f32.s32.to.zero.pseudo %v326
        %v329 = vpack.c.bf16 %v314, %v313
        %v330 = vld [vmem:[%s1] sm:$0xff]
        %v331 = vld [vmem:[%s1 + $0x8] sm:$0xf]
        %v332 = vld [vmem:[%s1 + $0xc] sm:$0xff]
        %v333 = vld [vmem:[%s1 + $0x14] sm:$0xf]
        %v334 = vld [vmem:[%s1 + $0x18] sm:$0xff]
        %v335 = vld [vmem:[%s1 + $0x20] sm:$0xf]
        %v336 = vld [vmem:[%s1 + $0x24] sm:$0xff]
        %v337 = vld [vmem:[%s1 + $0x2c] sm:$0xf]
        %v338 = vld [vmem:[%s2] sm:$0x7]
        %v340 = vlaneseq
        %v341 = vshrl.u32 %v340, 7
        %v342 = vsub.s32 0, %v341
        %v343 = vrot.slane %v338, %v342
        %v344 = vlaneseq
        %v345 = vshrl.u32 %v344, 7
        %v346 = vsub.s32 1, %v345
        %v347 = vrot.slane %v338, %v346
        %v348 = vlaneseq
        %v349 = vshrl.u32 %v348, 7
        %v350 = vsub.s32 2, %v349
        %v351 = vrot.slane %v338, %v350
        %v363 = vunpack.c.l.b16 %v330
        %v364 = vunpack.c.h.b16 %v330
        %v365 = vunpack.c.l.b16 %v331
        %v366 = vunpack.c.l.b16 %v332
        %v367 = vunpack.c.h.b16 %v332
        %v368 = vunpack.c.l.b16 %v333
        %v369 = vunpack.c.l.b16 %v334
        %v370 = vunpack.c.h.b16 %v334
        %v371 = vunpack.c.l.b16 %v335
        %v372 = vunpack.c.l.b16 %v336
        %v373 = vunpack.c.h.b16 %v336
        %v374 = vunpack.c.l.b16 %v337
        %v375 = vpack.c.b16 %v366, %v363
        %v376 = vpack.c.b16 %v367, %v364
        %v377 = vpack.c.b16 %v368, %v365
        %v378 = vpack.c.b16 %v372, %v369
        %v379 = vpack.c.b16 %v373, %v370
        %v380 = vpack.c.b16 %v374, %v371
        %v388 = vsel %vm320, %v329, 0
        %390 = vmatprep.subr.bf16.mxu0 %v376
        %391 = vmatpush1.bf16.msra.mxu0 %v375
        %392 = vmatprep.subr.bf16.mxu0 %v379
        %393 = vmatpush1.bf16.msra.mxu0 %v378
        %394 = vmatprep.subr.bf16.mxu0 0
        %395 = vmatpush1.bf16.msra.mxu0 0
        %396 = vmatprep.subr.bf16.mxu0 0
        %397 = vmatpush1.bf16.msra.mxu0 0
        %398 = vmatprep.subr.bf16.mxu0 0
        %399 = vmatpush1.bf16.msra.mxu0 0
        %400 = vmatprep.subr.bf16.mxu0 0
        %401 = vmatpush1.bf16.msra.mxu0 0
        %402 = vmatprep.subr.bf16.mxu0 0
        %403 = vmatpush1.bf16.msra.mxu0 0
        %404 = vmatprep.subr.bf16.mxu0 0
        %405 = vmatpush1.bf16.msra.mxu0 0
        %406 = vmatprep.subr.bf16.mxu0 0
        %407 = vmatpush1.bf16.msra.mxu0 0
        %408 = vmatprep.subr.bf16.mxu0 0
        %409 = vmatpush1.bf16.msra.mxu0 0
        %410 = vmatprep.subr.bf16.mxu0 0
        %411 = vmatpush1.bf16.msra.mxu0 0
        %412 = vmatprep.subr.bf16.mxu0 0
        %413 = vmatpush1.bf16.msra.mxu0 0
        %414 = vmatprep.subr.bf16.mxu0 0
        %415 = vmatpush1.bf16.msra.mxu0 0
        %416 = vmatprep.subr.bf16.mxu0 0
        %417 = vmatpush1.bf16.msra.mxu0 0
        %418 = vmatprep.subr.bf16.mxu0 0
        %419 = vmatpush1.bf16.msra.mxu0 0
        %420 = vmatprep.subr.bf16.mxu0 0
        %421 = vmatpush1.bf16.msra.mxu0 0
        %422 = vmatprep.mubr.bf16.mxu0 0
        %423 = vmatmul.mubr.bf16.gmra.mrb[0].mxu0 %v388
        %v424 = vpop.f32.mrb[0].mxu0
        %v425 = vadd.f32 %v343, %v424
        %v426 = vpop.f32.mrb[0].mxu0
        %v427 = vadd.f32 %v347, %v426
        %v428 = vpop.f32.mrb[0].mxu0
        %v429 = vadd.f32 %v343, %v428
        %v430 = vpop.f32.mrb[0].mxu0
        %v431 = vadd.f32 %v347, %v430
        %432 = vdwg.mxu0
        %433 = vmatprep.subr.bf16.mxu0 0
        %434 = vmatpush1.bf16.msra.mxu0 %v377
        %435 = vmatprep.subr.bf16.mxu0 0
        %436 = vmatpush1.bf16.msra.mxu0 %v380
        %437 = vmatprep.subr.bf16.mxu0 0
        %438 = vmatpush1.bf16.msra.mxu0 0
        %439 = vmatprep.subr.bf16.mxu0 0
        %440 = vmatpush1.bf16.msra.mxu0 0
        %441 = vmatprep.subr.bf16.mxu0 0
        %442 = vmatpush1.bf16.msra.mxu0 0
        %443 = vmatprep.subr.bf16.mxu0 0
        %444 = vmatpush1.bf16.msra.mxu0 0
        %445 = vmatprep.subr.bf16.mxu0 0
        %446 = vmatpush1.bf16.msra.mxu0 0
        %447 = vmatprep.subr.bf16.mxu0 0
        %448 = vmatpush1.bf16.msra.mxu0 0
        %449 = vmatprep.subr.bf16.mxu0 0
        %450 = vmatpush1.bf16.msra.mxu0 0
        %451 = vmatprep.subr.bf16.mxu0 0
        %452 = vmatpush1.bf16.msra.mxu0 0
        %453 = vmatprep.subr.bf16.mxu0 0
        %454 = vmatpush1.bf16.msra.mxu0 0
        %455 = vmatprep.subr.bf16.mxu0 0
        %456 = vmatpush1.bf16.msra.mxu0 0
        %457 = vmatprep.subr.bf16.mxu0 0
        %458 = vmatpush1.bf16.msra.mxu0 0
        %459 = vmatprep.subr.bf16.mxu0 0
        %460 = vmatpush1.bf16.msra.mxu0 0
        %461 = vmatprep.subr.bf16.mxu0 0
        %462 = vmatpush1.bf16.msra.mxu0 0
        %463 = vmatprep.subr.bf16.mxu0 0
        %464 = vmatpush1.bf16.msra.mxu0 0
        %465 = vmatprep.mubr.bf16.mxu0 0
        %466 = vmatmul.mubr.bf16.gmra.mrb[0].mxu0 %v388
        %v467 = vpop.f32.mrb[0].mxu0
        %v468 = vadd.f32 %v351, %v467
        %v469 = vpop.f32.mrb[0].mxu0
        %v470 = vpop.f32.mrb[0].mxu0
        %v471 = vadd.f32 %v351, %v470
        %v472 = vpop.f32.mrb[0].mxu0
        %473 = vdwg.mxu0
        %v474 = vtanh.pop %v425
        %v475 = vtanh.pop %v427
        %v476 = vtanh.pop %v468
        %v477 = vtanh.pop %v429
        %v478 = vtanh.pop %v431
        %v479 = vtanh.pop %v471
        %v480 = vpack.c.bf16 %v477, %v474
        %v481 = vpack.c.bf16 %v478, %v475
        %v482 = vpack.c.bf16 %v479, %v476
        %v483 = vld [vmem:[#allocation2] sm:$0xff]
        %v484 = vld [vmem:[#allocation2 + $0x8] sm:$0xf]
        %v485 = vld [vmem:[#allocation2 + $0xc] sm:$0xff]
        %v486 = vld [vmem:[#allocation2 + $0x14] sm:$0xf]
        %v487 = vld [vmem:[#allocation2 + $0x18] sm:$0xff]
        %v488 = vld [vmem:[#allocation2 + $0x20] sm:$0xf]
        %v489 = vld [vmem:[#allocation2 + $0x24] sm:$0xff]
        %v490 = vld [vmem:[#allocation2 + $0x2c] sm:$0xf]
        %v491 = vld [vmem:[#allocation2 + $0x30] sm:$0xff]
        %v492 = vld [vmem:[#allocation2 + $0x38] sm:$0xf]
        %v493 = vld [vmem:[#allocation2 + $0x3c] sm:$0xff]
        %v494 = vld [vmem:[#allocation2 + $0x44] sm:$0xf]
        %v495 = vld [vmem:[#allocation2 + $0x48] sm:$0xff]
        %v496 = vld [vmem:[#allocation2 + $0x50] sm:$0xf]
        %v497 = vld [vmem:[#allocation2 + $0x54] sm:$0xff]
        %v498 = vld [vmem:[#allocation2 + $0x5c] sm:$0xf]
        %v499 = vld [vmem:[#allocation2 + $0x60] sm:$0xff]
        %v500 = vld [vmem:[#allocation2 + $0x68] sm:$0xf]
        %v501 = vld [vmem:[#allocation2 + $0x6c] sm:$0xff]
        %v502 = vld [vmem:[#allocation2 + $0x74] sm:$0xf]
        %v503 = vld [vmem:[#allocation2 + $0x78] sm:$0xff]
        %v504 = vld [vmem:[#allocation2 + $0x80] sm:$0xf]
        %v505 = vld [vmem:[#allocation2 + $0x84] sm:$0xff]
        %v506 = vld [vmem:[#allocation2 + $0x8c] sm:$0xf]
        %v507 = vld [vmem:[#allocation2 + $0x90] sm:$0xff]
        %v508 = vld [vmem:[#allocation2 + $0x98] sm:$0xf]
        %v509 = vld [vmem:[#allocation2 + $0x9c] sm:$0xff]
        %v510 = vld [vmem:[#allocation2 + $0xa4] sm:$0xf]
        %v511 = vld [vmem:[#allocation2 + $0xa8] sm:$0xff]
        %v512 = vld [vmem:[#allocation2 + $0xb0] sm:$0xf]
        %v513 = vld [vmem:[#allocation2 + $0xb4] sm:$0xff]
        %v514 = vld [vmem:[#allocation2 + $0xbc] sm:$0xf]
        %v515 = vld [vmem:[#allocation2 + $0xc0] sm:$0xff]
        %v516 = vld [vmem:[#allocation2 + $0xc8] sm:$0xf]
        %v517 = vld [vmem:[#allocation2 + $0xcc] sm:$0xff]
        %v518 = vld [vmem:[#allocation2 + $0xd4] sm:$0xf]
        %v519 = vld [vmem:[#allocation2 + $0xd8] sm:$0xff]
        %v520 = vld [vmem:[#allocation2 + $0xe0] sm:$0xf]
        %v521 = vld [vmem:[#allocation2 + $0xe4] sm:$0xff]
        %v522 = vld [vmem:[#allocation2 + $0xec] sm:$0xf]
        %v523 = vld [vmem:[#allocation2 + $0xf0] sm:$0xff]
        %v524 = vld [vmem:[#allocation2 + $0xf8] sm:$0xf]
        %v525 = vld [vmem:[#allocation2 + $0xfc] sm:$0xff]
        %v526 = vld [vmem:[#allocation2 + $0x104] sm:$0xf]
        %v527 = vld [vmem:[#allocation2 + $0x108] sm:$0xff]
        %v528 = vld [vmem:[#allocation2 + $0x110] sm:$0xf]
        %v529 = vld [vmem:[#allocation2 + $0x114] sm:$0xff]
        %v530 = vld [vmem:[#allocation2 + $0x11c] sm:$0xf]
        %v531 = vld [vmem:[#allocation2 + $0x120] sm:$0xff]
        %v532 = vld [vmem:[#allocation2 + $0x128] sm:$0xf]
        %v533 = vld [vmem:[#allocation2 + $0x12c] sm:$0xff]
        %v534 = vld [vmem:[#allocation2 + $0x134] sm:$0xf]
        %v535 = vld [vmem:[#allocation2 + $0x138] sm:$0xff]
        %v536 = vld [vmem:[#allocation2 + $0x140] sm:$0xf]
        %v537 = vld [vmem:[#allocation2 + $0x144] sm:$0xff]
        %v538 = vld [vmem:[#allocation2 + $0x14c] sm:$0xf]
        %v539 = vld [vmem:[#allocation2 + $0x150] sm:$0xff]
        %v540 = vld [vmem:[#allocation2 + $0x158] sm:$0xf]
        %v541 = vld [vmem:[#allocation2 + $0x15c] sm:$0xff]
        %v542 = vld [vmem:[#allocation2 + $0x164] sm:$0xf]
        %v543 = vld [vmem:[#allocation2 + $0x168] sm:$0xff]
        %v544 = vld [vmem:[#allocation2 + $0x170] sm:$0xf]
        %v545 = vld [vmem:[#allocation2 + $0x174] sm:$0xff]
        %v546 = vld [vmem:[#allocation2 + $0x17c] sm:$0xf]
        %v547 = vld [vmem:[#allocation2 + $0x180] sm:$0xff]
        %v548 = vld [vmem:[#allocation2 + $0x188] sm:$0xf]
        %v549 = vld [vmem:[#allocation2 + $0x18c] sm:$0xff]
        %v550 = vld [vmem:[#allocation2 + $0x194] sm:$0xf]
        %v551 = vld [vmem:[#allocation2 + $0x198] sm:$0xff]
        %v552 = vld [vmem:[#allocation2 + $0x1a0] sm:$0xf]
        %v553 = vld [vmem:[#allocation2 + $0x1a4] sm:$0xff]
        %v554 = vld [vmem:[#allocation2 + $0x1ac] sm:$0xf]
        %v555 = vld [vmem:[#allocation2 + $0x1b0] sm:$0xff]
        %v556 = vld [vmem:[#allocation2 + $0x1b8] sm:$0xf]
        %v557 = vld [vmem:[#allocation2 + $0x1bc] sm:$0xff]
        %v558 = vld [vmem:[#allocation2 + $0x1c4] sm:$0xf]
        %v559 = vld [vmem:[#allocation2 + $0x1c8] sm:$0xff]
        %v560 = vld [vmem:[#allocation2 + $0x1d0] sm:$0xf]
        %v561 = vld [vmem:[#allocation2 + $0x1d4] sm:$0xff]
        %v562 = vld [vmem:[#allocation2 + $0x1dc] sm:$0xf]
        %v563 = vld [vmem:[#allocation2 + $0x1e0] sm:$0xff]
        %v564 = vld [vmem:[#allocation2 + $0x1e8] sm:$0xf]
        %v565 = vld [vmem:[#allocation2 + $0x1ec] sm:$0xff]
        %v566 = vld [vmem:[#allocation2 + $0x1f4] sm:$0xf]
        %v567 = vld [vmem:[#allocation2 + $0x1f8] sm:$0xff]
        %v568 = vld [vmem:[#allocation2 + $0x200] sm:$0xf]
        %v569 = vld [vmem:[#allocation2 + $0x204] sm:$0xff]
        %v570 = vld [vmem:[#allocation2 + $0x20c] sm:$0xf]
        %v571 = vld [vmem:[#allocation2 + $0x210] sm:$0xff]
        %v572 = vld [vmem:[#allocation2 + $0x218] sm:$0xf]
        %v573 = vld [vmem:[#allocation2 + $0x21c] sm:$0xff]
        %v574 = vld [vmem:[#allocation2 + $0x224] sm:$0xf]
        %v575 = vld [vmem:[#allocation2 + $0x228] sm:$0xff]
        %v576 = vld [vmem:[#allocation2 + $0x230] sm:$0xf]
        %v577 = vld [vmem:[#allocation2 + $0x234] sm:$0xff]
        %v578 = vld [vmem:[#allocation2 + $0x23c] sm:$0xf]
        %v579 = vld [vmem:[%s4] sm:$0x7]
        %v581 = vlaneseq
        %v582 = vshrl.u32 %v581, 7
        %v583 = vsub.s32 0, %v582
        %v584 = vrot.slane %v579, %v583
        %v585 = vlaneseq
        %v586 = vshrl.u32 %v585, 7
        %v587 = vsub.s32 1, %v586
        %v588 = vrot.slane %v579, %v587
        %v589 = vlaneseq
        %v590 = vshrl.u32 %v589, 7
        %v591 = vsub.s32 2, %v590
        %v592 = vrot.slane %v579, %v591
        %v692 = vunpack.c.l.b16 %v483
        %v693 = vunpack.c.h.b16 %v483
        %v694 = vunpack.c.l.b16 %v484
        %v695 = vunpack.c.l.b16 %v485
        %v696 = vunpack.c.h.b16 %v485
        %v697 = vunpack.c.l.b16 %v486
        %v698 = vunpack.c.l.b16 %v487
        %v699 = vunpack.c.h.b16 %v487
        %v700 = vunpack.c.l.b16 %v488
        %v701 = vunpack.c.l.b16 %v489
        %v702 = vunpack.c.h.b16 %v489
        %v703 = vunpack.c.l.b16 %v490
        %v704 = vunpack.c.l.b16 %v491
        %v705 = vunpack.c.h.b16 %v491
        %v706 = vunpack.c.l.b16 %v492
        %v707 = vunpack.c.l.b16 %v493
        %v708 = vunpack.c.h.b16 %v493
        %v709 = vunpack.c.l.b16 %v494
        %v710 = vunpack.c.l.b16 %v495
        %v711 = vunpack.c.h.b16 %v495
        %v712 = vunpack.c.l.b16 %v496
        %v713 = vunpack.c.l.b16 %v497
        %v714 = vunpack.c.h.b16 %v497
        %v715 = vunpack.c.l.b16 %v498
        %v716 = vunpack.c.l.b16 %v499
        %v717 = vunpack.c.h.b16 %v499
        %v718 = vunpack.c.l.b16 %v500
        %v719 = vunpack.c.l.b16 %v501
        %v720 = vunpack.c.h.b16 %v501
        %v721 = vunpack.c.l.b16 %v502
        %v722 = vunpack.c.l.b16 %v503
        %v723 = vunpack.c.h.b16 %v503
        %v724 = vunpack.c.l.b16 %v504
        %v725 = vunpack.c.l.b16 %v505
        %v726 = vunpack.c.h.b16 %v505
        %v727 = vunpack.c.l.b16 %v506
        %v728 = vunpack.c.l.b16 %v507
        %v729 = vunpack.c.h.b16 %v507
        %v730 = vunpack.c.l.b16 %v508
        %v731 = vunpack.c.l.b16 %v509
        %v732 = vunpack.c.h.b16 %v509
        %v733 = vunpack.c.l.b16 %v510
        %v734 = vunpack.c.l.b16 %v511
        %v735 = vunpack.c.h.b16 %v511
        %v736 = vunpack.c.l.b16 %v512
        %v737 = vunpack.c.l.b16 %v513
        %v738 = vunpack.c.h.b16 %v513
        %v739 = vunpack.c.l.b16 %v514
        %v740 = vunpack.c.l.b16 %v515
        %v741 = vunpack.c.h.b16 %v515
        %v742 = vunpack.c.l.b16 %v516
        %v743 = vunpack.c.l.b16 %v517
        %v744 = vunpack.c.h.b16 %v517
        %v745 = vunpack.c.l.b16 %v518
        %v746 = vunpack.c.l.b16 %v519
        %v747 = vunpack.c.h.b16 %v519
        %v748 = vunpack.c.l.b16 %v520
        %v749 = vunpack.c.l.b16 %v521
        %v750 = vunpack.c.h.b16 %v521
        %v751 = vunpack.c.l.b16 %v522
        %v752 = vunpack.c.l.b16 %v523
        %v753 = vunpack.c.h.b16 %v523
        %v754 = vunpack.c.l.b16 %v524
        %v755 = vunpack.c.l.b16 %v525
        %v756 = vunpack.c.h.b16 %v525
        %v757 = vunpack.c.l.b16 %v526
        %v758 = vunpack.c.l.b16 %v527
        %v759 = vunpack.c.h.b16 %v527
        %v760 = vunpack.c.l.b16 %v528
        %v761 = vunpack.c.l.b16 %v529
        %v762 = vunpack.c.h.b16 %v529
        %v763 = vunpack.c.l.b16 %v530
        %v764 = vunpack.c.l.b16 %v531
        %v765 = vunpack.c.h.b16 %v531
        %v766 = vunpack.c.l.b16 %v532
        %v767 = vunpack.c.l.b16 %v533
        %v768 = vunpack.c.h.b16 %v533
        %v769 = vunpack.c.l.b16 %v534
        %v770 = vunpack.c.l.b16 %v535
        %v771 = vunpack.c.h.b16 %v535
        %v772 = vunpack.c.l.b16 %v536
        %v773 = vunpack.c.l.b16 %v537
        %v774 = vunpack.c.h.b16 %v537
        %v775 = vunpack.c.l.b16 %v538
        %v776 = vunpack.c.l.b16 %v539
        %v777 = vunpack.c.h.b16 %v539
        %v778 = vunpack.c.l.b16 %v540
        %v779 = vunpack.c.l.b16 %v541
        %v780 = vunpack.c.h.b16 %v541
        %v781 = vunpack.c.l.b16 %v542
        %v782 = vunpack.c.l.b16 %v543
        %v783 = vunpack.c.h.b16 %v543
        %v784 = vunpack.c.l.b16 %v544
        %v785 = vunpack.c.l.b16 %v545
        %v786 = vunpack.c.h.b16 %v545
        %v787 = vunpack.c.l.b16 %v546
        %v788 = vunpack.c.l.b16 %v547
        %v789 = vunpack.c.h.b16 %v547
        %v790 = vunpack.c.l.b16 %v548
        %v791 = vunpack.c.l.b16 %v549
        %v792 = vunpack.c.h.b16 %v549
        %v793 = vunpack.c.l.b16 %v550
        %v794 = vunpack.c.l.b16 %v551
        %v795 = vunpack.c.h.b16 %v551
        %v796 = vunpack.c.l.b16 %v552
        %v797 = vunpack.c.l.b16 %v553
        %v798 = vunpack.c.h.b16 %v553
        %v799 = vunpack.c.l.b16 %v554
        %v800 = vunpack.c.l.b16 %v555
        %v801 = vunpack.c.h.b16 %v555
        %v802 = vunpack.c.l.b16 %v556
        %v803 = vunpack.c.l.b16 %v557
        %v804 = vunpack.c.h.b16 %v557
        %v805 = vunpack.c.l.b16 %v558
        %v806 = vunpack.c.l.b16 %v559
        %v807 = vunpack.c.h.b16 %v559
        %v808 = vunpack.c.l.b16 %v560
        %v809 = vunpack.c.l.b16 %v561
        %v810 = vunpack.c.h.b16 %v561
        %v811 = vunpack.c.l.b16 %v562
        %v812 = vunpack.c.l.b16 %v563
        %v813 = vunpack.c.h.b16 %v563
        %v814 = vunpack.c.l.b16 %v564
        %v815 = vunpack.c.l.b16 %v565
        %v816 = vunpack.c.h.b16 %v565
        %v817 = vunpack.c.l.b16 %v566
        %v818 = vunpack.c.l.b16 %v567
        %v819 = vunpack.c.h.b16 %v567
        %v820 = vunpack.c.l.b16 %v568
        %v821 = vunpack.c.l.b16 %v569
        %v822 = vunpack.c.h.b16 %v569
        %v823 = vunpack.c.l.b16 %v570
        %v824 = vunpack.c.l.b16 %v571
        %v825 = vunpack.c.h.b16 %v571
        %v826 = vunpack.c.l.b16 %v572
        %v827 = vunpack.c.l.b16 %v573
        %v828 = vunpack.c.h.b16 %v573
        %v829 = vunpack.c.l.b16 %v574
        %v830 = vunpack.c.l.b16 %v575
        %v831 = vunpack.c.h.b16 %v575
        %v832 = vunpack.c.l.b16 %v576
        %v833 = vunpack.c.l.b16 %v577
        %v834 = vunpack.c.h.b16 %v577
        %v835 = vunpack.c.l.b16 %v578
        %v836 = vpack.c.b16 %v695, %v692
        %v837 = vpack.c.b16 %v696, %v693
        %v838 = vpack.c.b16 %v697, %v694
        %v839 = vpack.c.b16 %v701, %v698
        %v840 = vpack.c.b16 %v702, %v699
        %v841 = vpack.c.b16 %v703, %v700
        %v842 = vpack.c.b16 %v707, %v704
        %v843 = vpack.c.b16 %v708, %v705
        %v844 = vpack.c.b16 %v709, %v706
        %v845 = vpack.c.b16 %v713, %v710
        %v846 = vpack.c.b16 %v714, %v711
        %v847 = vpack.c.b16 %v715, %v712
        %v848 = vpack.c.b16 %v719, %v716
        %v849 = vpack.c.b16 %v720, %v717
        %v850 = vpack.c.b16 %v721, %v718
        %v851 = vpack.c.b16 %v725, %v722
        %v852 = vpack.c.b16 %v726, %v723
        %v853 = vpack.c.b16 %v727, %v724
        %v854 = vpack.c.b16 %v731, %v728
        %v855 = vpack.c.b16 %v732, %v729
        %v856 = vpack.c.b16 %v733, %v730
        %v857 = vpack.c.b16 %v737, %v734
        %v858 = vpack.c.b16 %v738, %v735
        %v859 = vpack.c.b16 %v739, %v736
        %v860 = vpack.c.b16 %v743, %v740
        %v861 = vpack.c.b16 %v744, %v741
        %v862 = vpack.c.b16 %v745, %v742
        %v863 = vpack.c.b16 %v749, %v746
        %v864 = vpack.c.b16 %v750, %v747
        %v865 = vpack.c.b16 %v751, %v748
        %v866 = vpack.c.b16 %v755, %v752
        %v867 = vpack.c.b16 %v756, %v753
        %v868 = vpack.c.b16 %v757, %v754
        %v869 = vpack.c.b16 %v761, %v758
        %v870 = vpack.c.b16 %v762, %v759
        %v871 = vpack.c.b16 %v763, %v760
        %v872 = vpack.c.b16 %v767, %v764
        %v873 = vpack.c.b16 %v768, %v765
        %v874 = vpack.c.b16 %v769, %v766
        %v875 = vpack.c.b16 %v773, %v770
        %v876 = vpack.c.b16 %v774, %v771
        %v877 = vpack.c.b16 %v775, %v772
        %v878 = vpack.c.b16 %v779, %v776
        %v879 = vpack.c.b16 %v780, %v777
        %v880 = vpack.c.b16 %v781, %v778
        %v881 = vpack.c.b16 %v785, %v782
        %v882 = vpack.c.b16 %v786, %v783
        %v883 = vpack.c.b16 %v787, %v784
        %v884 = vpack.c.b16 %v791, %v788
        %v885 = vpack.c.b16 %v792, %v789
        %v886 = vpack.c.b16 %v793, %v790
        %v887 = vpack.c.b16 %v797, %v794
        %v888 = vpack.c.b16 %v798, %v795
        %v889 = vpack.c.b16 %v799, %v796
        %v890 = vpack.c.b16 %v803, %v800
        %v891 = vpack.c.b16 %v804, %v801
        %v892 = vpack.c.b16 %v805, %v802
        %v893 = vpack.c.b16 %v809, %v806
        %v894 = vpack.c.b16 %v810, %v807
        %v895 = vpack.c.b16 %v811, %v808
        %v896 = vpack.c.b16 %v815, %v812
        %v897 = vpack.c.b16 %v816, %v813
        %v898 = vpack.c.b16 %v817, %v814
        %v899 = vpack.c.b16 %v821, %v818
        %v900 = vpack.c.b16 %v822, %v819
        %v901 = vpack.c.b16 %v823, %v820
        %v902 = vpack.c.b16 %v827, %v824
        %v903 = vpack.c.b16 %v828, %v825
        %v904 = vpack.c.b16 %v829, %v826
        %v905 = vpack.c.b16 %v833, %v830
        %v906 = vpack.c.b16 %v834, %v831
        %v907 = vpack.c.b16 %v835, %v832
        %980 = vmatprep.subr.bf16.mxu0 %v837
        %981 = vmatpush1.bf16.msra.mxu0 %v836
        %982 = vmatprep.subr.bf16.mxu0 %v840
        %983 = vmatpush1.bf16.msra.mxu0 %v839
        %984 = vmatprep.subr.bf16.mxu0 %v843
        %985 = vmatpush1.bf16.msra.mxu0 %v842
        %986 = vmatprep.subr.bf16.mxu0 %v846
        %987 = vmatpush1.bf16.msra.mxu0 %v845
        %988 = vmatprep.subr.bf16.mxu0 %v849
        %989 = vmatpush1.bf16.msra.mxu0 %v848
        %990 = vmatprep.subr.bf16.mxu0 %v852
        %991 = vmatpush1.bf16.msra.mxu0 %v851
        %992 = vmatprep.subr.bf16.mxu0 %v855
        %993 = vmatpush1.bf16.msra.mxu0 %v854
        %994 = vmatprep.subr.bf16.mxu0 %v858
        %995 = vmatpush1.bf16.msra.mxu0 %v857
        %996 = vmatprep.subr.bf16.mxu0 %v861
        %997 = vmatpush1.bf16.msra.mxu0 %v860
        %998 = vmatprep.subr.bf16.mxu0 %v864
        %999 = vmatpush1.bf16.msra.mxu0 %v863
        %1000 = vmatprep.subr.bf16.mxu0 %v867
        %1001 = vmatpush1.bf16.msra.mxu0 %v866
        %1002 = vmatprep.subr.bf16.mxu0 %v870
        %1003 = vmatpush1.bf16.msra.mxu0 %v869
        %1004 = vmatprep.subr.bf16.mxu0 %v873
        %1005 = vmatpush1.bf16.msra.mxu0 %v872
        %1006 = vmatprep.subr.bf16.mxu0 %v876
        %1007 = vmatpush1.bf16.msra.mxu0 %v875
        %1008 = vmatprep.subr.bf16.mxu0 %v879
        %1009 = vmatpush1.bf16.msra.mxu0 %v878
        %1010 = vmatprep.subr.bf16.mxu0 %v882
        %1011 = vmatpush1.bf16.msra.mxu0 %v881
        %1012 = vmatprep.mubr.bf16.mxu0 %v481
        %1013 = vmatmul.mubr.bf16.gmra.mrb[0].mxu0 %v480
        %v1014 = vpop.f32.mrb[0].mxu0
        %v1015 = vadd.f32 %v584, %v1014
        %v1016 = vpop.f32.mrb[0].mxu0
        %v1017 = vadd.f32 %v588, %v1016
        %v1018 = vpop.f32.mrb[0].mxu0
        %v1019 = vadd.f32 %v584, %v1018
        %v1020 = vpop.f32.mrb[0].mxu0
        %v1021 = vadd.f32 %v588, %v1020
        %1022 = vdwg.mxu0
        %1023 = vmatprep.subr.bf16.mxu0 %v885
        %1024 = vmatpush1.bf16.msra.mxu0 %v884
        %1025 = vmatprep.subr.bf16.mxu0 %v888
        %1026 = vmatpush1.bf16.msra.mxu0 %v887
        %1027 = vmatprep.subr.bf16.mxu0 %v891
        %1028 = vmatpush1.bf16.msra.mxu0 %v890
        %1029 = vmatprep.subr.bf16.mxu0 %v894
        %1030 = vmatpush1.bf16.msra.mxu0 %v893
        %1031 = vmatprep.subr.bf16.mxu0 %v897
        %1032 = vmatpush1.bf16.msra.mxu0 %v896
        %1033 = vmatprep.subr.bf16.mxu0 %v900
        %1034 = vmatpush1.bf16.msra.mxu0 %v899
        %1035 = vmatprep.subr.bf16.mxu0 %v903
        %1036 = vmatpush1.bf16.msra.mxu0 %v902
        %1037 = vmatprep.subr.bf16.mxu0 %v906
        %1038 = vmatpush1.bf16.msra.mxu0 %v905
        %1039 = vmatprep.subr.bf16.mxu0 0
        %1040 = vmatpush1.bf16.msra.mxu0 0
        %1041 = vmatprep.subr.bf16.mxu0 0
        %1042 = vmatpush1.bf16.msra.mxu0 0
        %1043 = vmatprep.subr.bf16.mxu0 0
        %1044 = vmatpush1.bf16.msra.mxu0 0
        %1045 = vmatprep.subr.bf16.mxu0 0
        %1046 = vmatpush1.bf16.msra.mxu0 0
        %1047 = vmatprep.subr.bf16.mxu0 0
        %1048 = vmatpush1.bf16.msra.mxu0 0
        %1049 = vmatprep.subr.bf16.mxu0 0
        %1050 = vmatpush1.bf16.msra.mxu0 0
        %1051 = vmatprep.subr.bf16.mxu0 0
        %1052 = vmatpush1.bf16.msra.mxu0 0
        %1053 = vmatprep.subr.bf16.mxu0 0
        %1054 = vmatpush1.bf16.msra.mxu0 0
        %1055 = vmatprep.mubr.bf16.mxu0 0
        %1056 = vmatmul.mubr.bf16.gmra.mrb[0].mxu0 %v482
        %v1057 = vpop.f32.mrb[0].mxu0
        %v1058 = vadd.f32 %v1015, %v1057
        %v1059 = vpop.f32.mrb[0].mxu0
        %v1060 = vadd.f32 %v1017, %v1059
        %v1061 = vpop.f32.mrb[0].mxu0
        %v1062 = vadd.f32 %v1019, %v1061
        %v1063 = vpop.f32.mrb[0].mxu0
        %v1064 = vadd.f32 %v1021, %v1063
        %1065 = vdwg.mxu0
        %1066 = vmatprep.subr.bf16.mxu0 0
        %1067 = vmatpush1.bf16.msra.mxu0 %v838
        %1068 = vmatprep.subr.bf16.mxu0 0
        %1069 = vmatpush1.bf16.msra.mxu0 %v841
        %1070 = vmatprep.subr.bf16.mxu0 0
        %1071 = vmatpush1.bf16.msra.mxu0 %v844
        %1072 = vmatprep.subr.bf16.mxu0 0
        %1073 = vmatpush1.bf16.msra.mxu0 %v847
        %1074 = vmatprep.subr.bf16.mxu0 0
        %1075 = vmatpush1.bf16.msra.mxu0 %v850
        %1076 = vmatprep.subr.bf16.mxu0 0
        %1077 = vmatpush1.bf16.msra.mxu0 %v853
        %1078 = vmatprep.subr.bf16.mxu0 0
        %1079 = vmatpush1.bf16.msra.mxu0 %v856
        %1080 = vmatprep.subr.bf16.mxu0 0
        %1081 = vmatpush1.bf16.msra.mxu0 %v859
        %1082 = vmatprep.subr.bf16.mxu0 0
        %1083 = vmatpush1.bf16.msra.mxu0 %v862
        %1084 = vmatprep.subr.bf16.mxu0 0
        %1085 = vmatpush1.bf16.msra.mxu0 %v865
        %1086 = vmatprep.subr.bf16.mxu0 0
        %1087 = vmatpush1.bf16.msra.mxu0 %v868
        %1088 = vmatprep.subr.bf16.mxu0 0
        %1089 = vmatpush1.bf16.msra.mxu0 %v871
        %1090 = vmatprep.subr.bf16.mxu0 0
        %1091 = vmatpush1.bf16.msra.mxu0 %v874
        %1092 = vmatprep.subr.bf16.mxu0 0
        %1093 = vmatpush1.bf16.msra.mxu0 %v877
        %1094 = vmatprep.subr.bf16.mxu0 0
        %1095 = vmatpush1.bf16.msra.mxu0 %v880
        %1096 = vmatprep.subr.bf16.mxu0 0
        %1097 = vmatpush1.bf16.msra.mxu0 %v883
        %1098 = vmatprep.mubr.bf16.mxu0 %v481
        %1099 = vmatmul.mubr.bf16.gmra.mrb[0].mxu0 %v480
        %v1100 = vpop.f32.mrb[0].mxu0
        %v1101 = vadd.f32 %v592, %v1100
        %v1102 = vpop.f32.mrb[0].mxu0
        %v1103 = vpop.f32.mrb[0].mxu0
        %v1104 = vadd.f32 %v592, %v1103
        %v1105 = vpop.f32.mrb[0].mxu0
        %1106 = vdwg.mxu0
        %1107 = vmatprep.subr.bf16.mxu0 0
        %1108 = vmatpush1.bf16.msra.mxu0 %v886
        %1109 = vmatprep.subr.bf16.mxu0 0
        %1110 = vmatpush1.bf16.msra.mxu0 %v889
        %1111 = vmatprep.subr.bf16.mxu0 0
        %1112 = vmatpush1.bf16.msra.mxu0 %v892
        %1113 = vmatprep.subr.bf16.mxu0 0
        %1114 = vmatpush1.bf16.msra.mxu0 %v895
        %1115 = vmatprep.subr.bf16.mxu0 0
        %1116 = vmatpush1.bf16.msra.mxu0 %v898
        %1117 = vmatprep.subr.bf16.mxu0 0
        %1118 = vmatpush1.bf16.msra.mxu0 %v901
        %1119 = vmatprep.subr.bf16.mxu0 0
        %1120 = vmatpush1.bf16.msra.mxu0 %v904
        %1121 = vmatprep.subr.bf16.mxu0 0
        %1122 = vmatpush1.bf16.msra.mxu0 %v907
        %1123 = vmatprep.subr.bf16.mxu0 0
        %1124 = vmatpush1.bf16.msra.mxu0 0
        %1125 = vmatprep.subr.bf16.mxu0 0
        %1126 = vmatpush1.bf16.msra.mxu0 0
        %1127 = vmatprep.subr.bf16.mxu0 0
        %1128 = vmatpush1.bf16.msra.mxu0 0
        %1129 = vmatprep.subr.bf16.mxu0 0
        %1130 = vmatpush1.bf16.msra.mxu0 0
        %1131 = vmatprep.subr.bf16.mxu0 0
        %1132 = vmatpush1.bf16.msra.mxu0 0
        %1133 = vmatprep.subr.bf16.mxu0 0
        %1134 = vmatpush1.bf16.msra.mxu0 0
        %1135 = vmatprep.subr.bf16.mxu0 0
        %1136 = vmatpush1.bf16.msra.mxu0 0
        %1137 = vmatprep.subr.bf16.mxu0 0
        %1138 = vmatpush1.bf16.msra.mxu0 0
        %1139 = vmatprep.mubr.bf16.mxu0 0
        %1140 = vmatmul.mubr.bf16.gmra.mrb[0].mxu0 %v482
        %v1141 = vpop.f32.mrb[0].mxu0
        %v1142 = vadd.f32 %v1101, %v1141
        %v1143 = vpop.f32.mrb[0].mxu0
        %v1144 = vpop.f32.mrb[0].mxu0
        %v1145 = vadd.f32 %v1104, %v1144
        %v1146 = vpop.f32.mrb[0].mxu0
        %1147 = vdwg.mxu0
        %v1148 = vtanh.pop %v1058
        %v1149 = vtanh.pop %v1060
        %v1150 = vtanh.pop %v1142
        %v1151 = vtanh.pop %v1062
        %v1152 = vtanh.pop %v1064
        %v1153 = vtanh.pop %v1145
        %v1154 = vpack.c.bf16 %v1151, %v1148
        %v1155 = vpack.c.bf16 %v1152, %v1149
        %v1156 = vpack.c.bf16 %v1153, %v1150
        %v1157 = vld [vmem:[#allocation4] sm:$0xff]
        %v1158 = vld [vmem:[#allocation4 + $0x8] sm:$0xff]
        %v1159 = vld [vmem:[#allocation4 + $0x10] sm:$0xff]
        %v1160 = vld [vmem:[#allocation4 + $0x18] sm:$0xff]
        %v1161 = vld [vmem:[#allocation4 + $0x20] sm:$0xff]
        %v1162 = vld [vmem:[#allocation4 + $0x28] sm:$0xff]
        %v1163 = vld [vmem:[#allocation4 + $0x30] sm:$0xff]
        %v1164 = vld [vmem:[#allocation4 + $0x38] sm:$0xff]
        %v1165 = vld [vmem:[#allocation4 + $0x40] sm:$0xff]
        %v1166 = vld [vmem:[#allocation4 + $0x48] sm:$0xff]
        %v1167 = vld [vmem:[#allocation4 + $0x50] sm:$0xff]
        %v1168 = vld [vmem:[#allocation4 + $0x58] sm:$0xff]
        %v1169 = vld [vmem:[#allocation4 + $0x60] sm:$0xff]
        %v1170 = vld [vmem:[#allocation4 + $0x68] sm:$0xff]
        %v1171 = vld [vmem:[#allocation4 + $0x70] sm:$0xff]
        %v1172 = vld [vmem:[#allocation4 + $0x78] sm:$0xff]
        %v1173 = vld [vmem:[#allocation4 + $0x80] sm:$0xff]
        %v1174 = vld [vmem:[#allocation4 + $0x88] sm:$0xff]
        %v1175 = vld [vmem:[#allocation4 + $0x90] sm:$0xff]
        %v1176 = vld [vmem:[#allocation4 + $0x98] sm:$0xff]
        %v1177 = vld [vmem:[#allocation4 + $0xa0] sm:$0xff]
        %v1178 = vld [vmem:[#allocation4 + $0xa8] sm:$0xff]
        %v1179 = vld [vmem:[#allocation4 + $0xb0] sm:$0xff]
        %v1180 = vld [vmem:[#allocation4 + $0xb8] sm:$0xff]
        %v1181 = vld [vmem:[#allocation4 + $0xc0] sm:$0xff]
        %v1182 = vld [vmem:[#allocation4 + $0xc8] sm:$0xff]
        %v1183 = vld [vmem:[#allocation4 + $0xd0] sm:$0xff]
        %v1184 = vld [vmem:[#allocation4 + $0xd8] sm:$0xff]
        %v1185 = vld [vmem:[#allocation4 + $0xe0] sm:$0xff]
        %v1186 = vld [vmem:[#allocation4 + $0xe8] sm:$0xff]
        %v1187 = vld [vmem:[#allocation4 + $0xf0] sm:$0xff]
        %v1188 = vld [vmem:[#allocation4 + $0xf8] sm:$0xff]
        %v1189 = vld [vmem:[#allocation4 + $0x100] sm:$0xff]
        %v1190 = vld [vmem:[#allocation4 + $0x108] sm:$0xff]
        %v1191 = vld [vmem:[#allocation4 + $0x110] sm:$0xff]
        %v1192 = vld [vmem:[#allocation4 + $0x118] sm:$0xff]
        %v1193 = vld [vmem:[#allocation4 + $0x120] sm:$0xff]
        %v1194 = vld [vmem:[#allocation4 + $0x128] sm:$0xff]
        %v1195 = vld [vmem:[#allocation4 + $0x130] sm:$0xff]
        %v1196 = vld [vmem:[#allocation4 + $0x138] sm:$0xff]
        %v1197 = vld [vmem:[#allocation4 + $0x140] sm:$0xff]
        %v1198 = vld [vmem:[#allocation4 + $0x148] sm:$0xff]
        %v1199 = vld [vmem:[#allocation4 + $0x150] sm:$0xff]
        %v1200 = vld [vmem:[#allocation4 + $0x158] sm:$0xff]
        %v1201 = vld [vmem:[#allocation4 + $0x160] sm:$0xff]
        %v1202 = vld [vmem:[#allocation4 + $0x168] sm:$0xff]
        %v1203 = vld [vmem:[#allocation4 + $0x170] sm:$0xff]
        %v1204 = vld [vmem:[#allocation4 + $0x178] sm:$0xff]
        %v1205 = vld [vmem:[%s6] sm:$0x3]
        %v1207 = vlaneseq
        %v1208 = vshrl.u32 %v1207, 7
        %v1209 = vsub.s32 0, %v1208
        %v1210 = vrot.slane %v1205, %v1209
        %v1211 = vlaneseq
        %v1212 = vshrl.u32 %v1211, 7
        %v1213 = vsub.s32 1, %v1212
        %v1214 = vrot.slane %v1205, %v1213
        %v1265 = vunpack.c.l.b16 %v1157
        %v1266 = vunpack.c.h.b16 %v1157
        %v1267 = vunpack.c.l.b16 %v1158
        %v1268 = vunpack.c.h.b16 %v1158
        %v1269 = vunpack.c.l.b16 %v1159
        %v1270 = vunpack.c.h.b16 %v1159
        %v1271 = vunpack.c.l.b16 %v1160
        %v1272 = vunpack.c.h.b16 %v1160
        %v1273 = vunpack.c.l.b16 %v1161
        %v1274 = vunpack.c.h.b16 %v1161
        %v1275 = vunpack.c.l.b16 %v1162
        %v1276 = vunpack.c.h.b16 %v1162
        %v1277 = vunpack.c.l.b16 %v1163
        %v1278 = vunpack.c.h.b16 %v1163
        %v1279 = vunpack.c.l.b16 %v1164
        %v1280 = vunpack.c.h.b16 %v1164
        %v1281 = vunpack.c.l.b16 %v1165
        %v1282 = vunpack.c.h.b16 %v1165
        %v1283 = vunpack.c.l.b16 %v1166
        %v1284 = vunpack.c.h.b16 %v1166
        %v1285 = vunpack.c.l.b16 %v1167
        %v1286 = vunpack.c.h.b16 %v1167
        %v1287 = vunpack.c.l.b16 %v1168
        %v1288 = vunpack.c.h.b16 %v1168
        %v1289 = vunpack.c.l.b16 %v1169
        %v1290 = vunpack.c.h.b16 %v1169
        %v1291 = vunpack.c.l.b16 %v1170
        %v1292 = vunpack.c.h.b16 %v1170
        %v1293 = vunpack.c.l.b16 %v1171
        %v1294 = vunpack.c.h.b16 %v1171
        %v1295 = vunpack.c.l.b16 %v1172
        %v1296 = vunpack.c.h.b16 %v1172
        %v1297 = vunpack.c.l.b16 %v1173
        %v1298 = vunpack.c.h.b16 %v1173
        %v1299 = vunpack.c.l.b16 %v1174
        %v1300 = vunpack.c.h.b16 %v1174
        %v1301 = vunpack.c.l.b16 %v1175
        %v1302 = vunpack.c.h.b16 %v1175
        %v1303 = vunpack.c.l.b16 %v1176
        %v1304 = vunpack.c.h.b16 %v1176
        %v1305 = vunpack.c.l.b16 %v1177
        %v1306 = vunpack.c.h.b16 %v1177
        %v1307 = vunpack.c.l.b16 %v1178
        %v1308 = vunpack.c.h.b16 %v1178
        %v1309 = vunpack.c.l.b16 %v1179
        %v1310 = vunpack.c.h.b16 %v1179
        %v1311 = vunpack.c.l.b16 %v1180
        %v1312 = vunpack.c.h.b16 %v1180
        %v1313 = vunpack.c.l.b16 %v1181
        %v1314 = vunpack.c.h.b16 %v1181
        %v1315 = vunpack.c.l.b16 %v1182
        %v1316 = vunpack.c.h.b16 %v1182
        %v1317 = vunpack.c.l.b16 %v1183
        %v1318 = vunpack.c.h.b16 %v1183
        %v1319 = vunpack.c.l.b16 %v1184
        %v1320 = vunpack.c.h.b16 %v1184
        %v1321 = vunpack.c.l.b16 %v1185
        %v1322 = vunpack.c.h.b16 %v1185
        %v1323 = vunpack.c.l.b16 %v1186
        %v1324 = vunpack.c.h.b16 %v1186
        %v1325 = vunpack.c.l.b16 %v1187
        %v1326 = vunpack.c.h.b16 %v1187
        %v1327 = vunpack.c.l.b16 %v1188
        %v1328 = vunpack.c.h.b16 %v1188
        %v1329 = vunpack.c.l.b16 %v1189
        %v1330 = vunpack.c.h.b16 %v1189
        %v1331 = vunpack.c.l.b16 %v1190
        %v1332 = vunpack.c.h.b16 %v1190
        %v1333 = vunpack.c.l.b16 %v1191
        %v1334 = vunpack.c.h.b16 %v1191
        %v1335 = vunpack.c.l.b16 %v1192
        %v1336 = vunpack.c.h.b16 %v1192
        %v1337 = vunpack.c.l.b16 %v1193
        %v1338 = vunpack.c.h.b16 %v1193
        %v1339 = vunpack.c.l.b16 %v1194
        %v1340 = vunpack.c.h.b16 %v1194
        %v1341 = vunpack.c.l.b16 %v1195
        %v1342 = vunpack.c.h.b16 %v1195
        %v1343 = vunpack.c.l.b16 %v1196
        %v1344 = vunpack.c.h.b16 %v1196
        %v1345 = vunpack.c.l.b16 %v1197
        %v1346 = vunpack.c.h.b16 %v1197
        %v1347 = vunpack.c.l.b16 %v1198
        %v1348 = vunpack.c.h.b16 %v1198
        %v1349 = vunpack.c.l.b16 %v1199
        %v1350 = vunpack.c.h.b16 %v1199
        %v1351 = vunpack.c.l.b16 %v1200
        %v1352 = vunpack.c.h.b16 %v1200
        %v1353 = vunpack.c.l.b16 %v1201
        %v1354 = vunpack.c.h.b16 %v1201
        %v1355 = vunpack.c.l.b16 %v1202
        %v1356 = vunpack.c.h.b16 %v1202
        %v1357 = vunpack.c.l.b16 %v1203
        %v1358 = vunpack.c.h.b16 %v1203
        %v1359 = vunpack.c.l.b16 %v1204
        %v1360 = vunpack.c.h.b16 %v1204
        %v1361 = vpack.c.b16 %v1267, %v1265
        %v1362 = vpack.c.b16 %v1268, %v1266
        %v1363 = vpack.c.b16 %v1271, %v1269
        %v1364 = vpack.c.b16 %v1272, %v1270
        %v1365 = vpack.c.b16 %v1275, %v1273
        %v1366 = vpack.c.b16 %v1276, %v1274
        %v1367 = vpack.c.b16 %v1279, %v1277
        %v1368 = vpack.c.b16 %v1280, %v1278
        %v1369 = vpack.c.b16 %v1283, %v1281
        %v1370 = vpack.c.b16 %v1284, %v1282
        %v1371 = vpack.c.b16 %v1287, %v1285
        %v1372 = vpack.c.b16 %v1288, %v1286
        %v1373 = vpack.c.b16 %v1291, %v1289
        %v1374 = vpack.c.b16 %v1292, %v1290
        %v1375 = vpack.c.b16 %v1295, %v1293
        %v1376 = vpack.c.b16 %v1296, %v1294
        %v1377 = vpack.c.b16 %v1299, %v1297
        %v1378 = vpack.c.b16 %v1300, %v1298
        %v1379 = vpack.c.b16 %v1303, %v1301
        %v1380 = vpack.c.b16 %v1304, %v1302
        %v1381 = vpack.c.b16 %v1307, %v1305
        %v1382 = vpack.c.b16 %v1308, %v1306
        %v1383 = vpack.c.b16 %v1311, %v1309
        %v1384 = vpack.c.b16 %v1312, %v1310
        %v1385 = vpack.c.b16 %v1315, %v1313
        %v1386 = vpack.c.b16 %v1316, %v1314
        %v1387 = vpack.c.b16 %v1319, %v1317
        %v1388 = vpack.c.b16 %v1320, %v1318
        %v1389 = vpack.c.b16 %v1323, %v1321
        %v1390 = vpack.c.b16 %v1324, %v1322
        %v1391 = vpack.c.b16 %v1327, %v1325
        %v1392 = vpack.c.b16 %v1328, %v1326
        %v1393 = vpack.c.b16 %v1331, %v1329
        %v1394 = vpack.c.b16 %v1332, %v1330
        %v1395 = vpack.c.b16 %v1335, %v1333
        %v1396 = vpack.c.b16 %v1336, %v1334
        %v1397 = vpack.c.b16 %v1339, %v1337
        %v1398 = vpack.c.b16 %v1340, %v1338
        %v1399 = vpack.c.b16 %v1343, %v1341
        %v1400 = vpack.c.b16 %v1344, %v1342
        %v1401 = vpack.c.b16 %v1347, %v1345
        %v1402 = vpack.c.b16 %v1348, %v1346
        %v1403 = vpack.c.b16 %v1351, %v1349
        %v1404 = vpack.c.b16 %v1352, %v1350
        %v1405 = vpack.c.b16 %v1355, %v1353
        %v1406 = vpack.c.b16 %v1356, %v1354
        %v1407 = vpack.c.b16 %v1359, %v1357
        %v1408 = vpack.c.b16 %v1360, %v1358
        %1457 = vmatprep.subr.bf16.mxu0 %v1362
        %1458 = vmatpush1.bf16.msra.mxu0 %v1361
        %1459 = vmatprep.subr.bf16.mxu0 %v1364
        %1460 = vmatpush1.bf16.msra.mxu0 %v1363
        %1461 = vmatprep.subr.bf16.mxu0 %v1366
        %1462 = vmatpush1.bf16.msra.mxu0 %v1365
        %1463 = vmatprep.subr.bf16.mxu0 %v1368
        %1464 = vmatpush1.bf16.msra.mxu0 %v1367
        %1465 = vmatprep.subr.bf16.mxu0 %v1370
        %1466 = vmatpush1.bf16.msra.mxu0 %v1369
        %1467 = vmatprep.subr.bf16.mxu0 %v1372
        %1468 = vmatpush1.bf16.msra.mxu0 %v1371
        %1469 = vmatprep.subr.bf16.mxu0 %v1374
        %1470 = vmatpush1.bf16.msra.mxu0 %v1373
        %1471 = vmatprep.subr.bf16.mxu0 %v1376
        %1472 = vmatpush1.bf16.msra.mxu0 %v1375
        %1473 = vmatprep.subr.bf16.mxu0 %v1378
        %1474 = vmatpush1.bf16.msra.mxu0 %v1377
        %1475 = vmatprep.subr.bf16.mxu0 %v1380
        %1476 = vmatpush1.bf16.msra.mxu0 %v1379
        %1477 = vmatprep.subr.bf16.mxu0 %v1382
        %1478 = vmatpush1.bf16.msra.mxu0 %v1381
        %1479 = vmatprep.subr.bf16.mxu0 %v1384
        %1480 = vmatpush1.bf16.msra.mxu0 %v1383
        %1481 = vmatprep.subr.bf16.mxu0 %v1386
        %1482 = vmatpush1.bf16.msra.mxu0 %v1385
        %1483 = vmatprep.subr.bf16.mxu0 %v1388
        %1484 = vmatpush1.bf16.msra.mxu0 %v1387
        %1485 = vmatprep.subr.bf16.mxu0 %v1390
        %1486 = vmatpush1.bf16.msra.mxu0 %v1389
        %1487 = vmatprep.subr.bf16.mxu0 %v1392
        %1488 = vmatpush1.bf16.msra.mxu0 %v1391
        %1489 = vmatprep.mubr.bf16.mxu0 %v1155
        %1490 = vmatmul.mubr.bf16.gmra.mrb[0].mxu0 %v1154
        %v1491 = vpop.f32.mrb[0].mxu0
        %v1492 = vadd.f32 %v1210, %v1491
        %v1493 = vpop.f32.mrb[0].mxu0
        %v1494 = vadd.f32 %v1214, %v1493
        %v1495 = vpop.f32.mrb[0].mxu0
        %v1496 = vadd.f32 %v1210, %v1495
        %v1497 = vpop.f32.mrb[0].mxu0
        %v1498 = vadd.f32 %v1214, %v1497
        %1499 = vdwg.mxu0
        %1500 = vmatprep.subr.bf16.mxu0 %v1394
        %1501 = vmatpush1.bf16.msra.mxu0 %v1393
        %1502 = vmatprep.subr.bf16.mxu0 %v1396
        %1503 = vmatpush1.bf16.msra.mxu0 %v1395
        %1504 = vmatprep.subr.bf16.mxu0 %v1398
        %1505 = vmatpush1.bf16.msra.mxu0 %v1397
        %1506 = vmatprep.subr.bf16.mxu0 %v1400
        %1507 = vmatpush1.bf16.msra.mxu0 %v1399
        %1508 = vmatprep.subr.bf16.mxu0 %v1402
        %1509 = vmatpush1.bf16.msra.mxu0 %v1401
        %1510 = vmatprep.subr.bf16.mxu0 %v1404
        %1511 = vmatpush1.bf16.msra.mxu0 %v1403
        %1512 = vmatprep.subr.bf16.mxu0 %v1406
        %1513 = vmatpush1.bf16.msra.mxu0 %v1405
        %1514 = vmatprep.subr.bf16.mxu0 %v1408
        %1515 = vmatpush1.bf16.msra.mxu0 %v1407
        %1516 = vmatprep.subr.bf16.mxu0 0
        %1517 = vmatpush1.bf16.msra.mxu0 0
        %1518 = vmatprep.subr.bf16.mxu0 0
        %1519 = vmatpush1.bf16.msra.mxu0 0
        %1520 = vmatprep.subr.bf16.mxu0 0
        %1521 = vmatpush1.bf16.msra.mxu0 0
        %1522 = vmatprep.subr.bf16.mxu0 0
        %1523 = vmatpush1.bf16.msra.mxu0 0
        %1524 = vmatprep.subr.bf16.mxu0 0
        %1525 = vmatpush1.bf16.msra.mxu0 0
        %1526 = vmatprep.subr.bf16.mxu0 0
        %1527 = vmatpush1.bf16.msra.mxu0 0
        %1528 = vmatprep.subr.bf16.mxu0 0
        %1529 = vmatpush1.bf16.msra.mxu0 0
        %1530 = vmatprep.subr.bf16.mxu0 0
        %1531 = vmatpush1.bf16.msra.mxu0 0
        %1532 = vmatprep.mubr.bf16.mxu0 0
        %1533 = vmatmul.mubr.bf16.gmra.mrb[0].mxu0 %v1156
        %v1534 = vpop.f32.mrb[0].mxu0
        %v1535 = vadd.f32 %v1492, %v1534
        %v1536 = vpop.f32.mrb[0].mxu0
        %v1537 = vadd.f32 %v1494, %v1536
        %v1538 = vpop.f32.mrb[0].mxu0
        %v1539 = vadd.f32 %v1496, %v1538
        %v1540 = vpop.f32.mrb[0].mxu0
        %v1541 = vadd.f32 %v1498, %v1540
        %1542 = vdwg.mxu0
        %1543 = vadd.xlane.f32.xlu0 %v1537
        %v1544 = vpop.xlane.xlu0 %1543
        %1545 = vadd.xlane.f32.xlu0 %v1541
        %v1546 = vpop.xlane.xlu0 %1545
        %1547 = vmax.xlane.f32.xlu0 %v1535
        %v1548 = vpop.xlane.xlu0 %1547
        %1549 = vmax.xlane.f32.xlu0 %v1539
        %v1550 = vpop.xlane.xlu0 %1549
        %v1551 = vsub.f32 %v1535, %v1548
        %v1552 = vsub.f32 %v1539, %v1550
        %v1553 = vmul.f32 %v1551, 1.442695
        %v1554 = vpow.pop %v1553
        %v1555 = vmul.f32 %v1552, 1.442695
        %v1556 = vpow.pop %v1555
        %1557 = vadd.xlane.f32.xlu0 %v1554
        %v1558 = vpop.xlane.xlu0 %1557
        %1559 = vadd.xlane.f32.xlu0 %v1556
        %v1560 = vpop.xlane.xlu0 %1559
        %v1561 = vrcp.pop %v1558
        %v1562 = vmul.f32 %v1554, %v1561
        %v1563 = vrcp.pop %v1560
        %v1564 = vmul.f32 %v1556, %v1563
        %v1565 = vlog2.pop %v1558
        %v1566 = vmul.f32 %v1565, 0.6931472
        %v1567 = vlog2.pop %v1560
        %v1568 = vmul.f32 %v1567, 0.6931472
        %v1569 = vsub.f32 %v1551, %v1566
        %v1570 = vsub.f32 %v1552, %v1568
        %vm1571 = vcmp.eq.s32.totalorder %v316, %v327
        %vm1572 = vcmp.eq.s32.totalorder %v316, %v328
        %v1573 = vsel %vm1571, %v1569, 0.0
        %v1574 = vsel %vm1572, %v1570, 0.0
        %1575 = vadd.xlane.f32.xlu0 %v1573
        %v1576 = vpop.xlane.xlu0 %1575
        %1577 = vadd.xlane.f32.xlu0 %v1574
        %v1578 = vpop.xlane.xlu0 %1577
        %v1579 = vmul.f32 %v1562, %v1569
        %v1580 = vmul.f32 %v1564, %v1570
        %1581 = vadd.xlane.f32.xlu0 %v1579
        %v1582 = vpop.xlane.xlu0 %1581
        %1583 = vadd.xlane.f32.xlu0 %v1580
        %v1584 = vpop.xlane.xlu0 %1583
        %v1585 = vsub.f32 0.0, %v1582
        %v1586 = vsub.f32 0.0, %v1584
        %1587 = vrot.lane.b32.xlu0 %v1569, 16
        %v1588 = vpop.permute.xlu0 %1587
        %1589 = vrot.lane.b32.xlu0 %v1570, 16
        %v1590 = vpop.permute.xlu0 %1589
        %vm1591 = vcmp.lt.s32.totalorder %v316, 8
        %v1592 = vsel %vm1591, 1, 0
        %v1593 = vcvt.s32.f32 %v1592
        %v1594 = vmul.f32 %v1562, %v1593
        %v1595 = vmul.f32 %v1564, %v1593
        %vm1596 = vcmp.eq.s32.totalorder %v316, 8
        %v1597 = vsel %vm1596, 1, 0
        %v1598 = vcvt.s32.f32 %v1597
        %v1599 = vmul.f32 %v1576, %v1598
        %v1600 = vmul.f32 %v1578, %v1598
        %v1601 = vadd.f32 %v1594, %v1599
        %v1602 = vadd.f32 %v1595, %v1600
        %vm1603 = vcmp.eq.s32.totalorder %v316, 9
        %v1604 = vsel %vm1603, 1, 0
        %v1605 = vcvt.s32.f32 %v1604
        %v1606 = vmul.f32 %v1544, %v1605
        %v1607 = vmul.f32 %v1546, %v1605
        %v1608 = vadd.f32 %v1601, %v1606
        %v1609 = vadd.f32 %v1602, %v1607
        %vm1610 = vcmp.eq.s32.totalorder %v316, 10
        %v1611 = vsel %vm1610, 1, 0
        %v1612 = vcvt.s32.f32 %v1611
        %v1613 = vmul.f32 %v1585, %v1612
        %v1614 = vmul.f32 %v1586, %v1612
        %v1615 = vadd.f32 %v1608, %v1613
        %v1616 = vadd.f32 %v1609, %v1614
        %vm1617 = vcmp.ge.s32.totalorder %v316, 16
        %vm1618 = vcmp.lt.s32.totalorder %v316, 24
        %vm1619 = vmand %vm1617, %vm1618
        %v1620 = vsel %vm1619, 1, 0
        %v1621 = vcvt.s32.f32 %v1620
        %v1622 = vmul.f32 %v1588, %v1621
        %v1623 = vmul.f32 %v1590, %v1621
        %v1624 = vadd.f32 %v1615, %v1622
        %v1625 = vadd.f32 %v1616, %v1623
        %1626 = vst [vmem:[%s310] sm:$0xff] %v1624
        %1627 = vst [vmem:[%s310 + $0x8] sm:$0xff] %v1625
        %s1628 = smul.u32 2, %s20
        %p1629 = scmp.lt.s32.totalorder %s1628, 3
        %s1630 = scalar_select %p1629, %s1628, 3
        %s1631 = smul.addr %s1630, 8
        %s1632 = scalar_lea.vmem %s7, %s1631
        // Predicated region
        $region57: #{_forward.1} parent=47 // pred_check
          %p1633 = pneg %p190
        $region58: #{_forward.1} parent=47 // pred_check_branch
          %1635 = sbr.rel (%p1633) target = $region60
        $region59: #{_forward.1} parent=47 // pred_region
          %s1636 = smul.u32 2, %s20
        $region60: #{_forward.1} parent=47 // pred_fallthru
          _
      $region48: #{_forward.1} parent=5 // pred_fallthru
        _
      %p1637 = scmp.le.s32.totalorder 2, %s15
      // Predicated region
      $region61: #{_forward.1} parent=5 // pred_check
        %p1638 = pneg %p1637
      $region62: #{_forward.1} parent=5 // pred_check_branch
        %1640 = sbr.rel (%p1638) target = $region64
      $region63: #{_forward.1} parent=5 // pred_region
        %s1641 = ssub.s32 %s15, 2
        // Predicated region
        $region65: #{_forward.1} parent=63 // pred_check
          %p1642 = pneg %p196
        $region66: #{_forward.1} parent=63 // pred_check_branch
          %1644 = sbr.rel (%p1642) target = $region68
        $region67: #{_forward.1} parent=63 // pred_region
          %s1645 = smul.u32 2, %s21
          %p1646 = scmp.lt.s32.totalorder %s1645, 3
          %s1647 = scalar_select %p1646, %s1645, 3
          %s1648 = smul.addr %s1647, 8
          %s1649 = scalar_lea.vmem %s7, %s1648
        $region68: #{_forward.1} parent=63 // pred_fallthru
          _
      $region64: #{_forward.1} parent=5 // pred_fallthru
        _
    $region6: #{_forward.1} parent=1 // loop_footer
      %s19 = sadd.s32 1, %s15
    $region7: #{_forward.1} parent=1 // loop_footer_branch
      %14 = sbr.rel target = $region3
    $region8: #{_forward.1} parent=1 // loop_exit
      _
    %1650 = vsyncpa [#allocation3], 1
    %s1651 = scalar_lea.sflag [#allocation3], 1
    %1652 = vsyncpa %s1651, 1
    %1653 = vsyncpa [#allocation5], 1

</llo_original>
